<compile_context>
chip_gen: v7x
topology: tpu7x:2x2x1
jax: 0.10.0
libtpu: 0.0.40
codegen_flags: <defaults>
</compile_context>

<pallas_src>
import functools

import jax
import jax.numpy as jnp
import numpy as np
from jax import lax
from jax.experimental import pallas as pl
from jax.experimental.pallas import tpu as pltpu


def _round_up(x, m):
    return (x + m - 1) // m * m


@functools.lru_cache(maxsize=None)
def _vmem_limit_bytes():
    """~75% of this generation's VMEM (v5e/v6e -> 96 MiB cap, v7x -> 48 MiB)."""
    cap = 64 * 1024 * 1024
    try:
        cap = int(pltpu.get_tpu_info().vmem_capacity_bytes)
    except Exception:
        pass
    return int(min(cap * 3 // 4, 96 * 1024 * 1024))


def _pick_row_tile(ho, wo, k_lanes):
    """Output rows per grid step: target ~1-2K output pixels, bounded so the
    in-kernel (pixels, K) LHS stays a few MiB.  pixels-per-block must be a
    multiple of 8 (unmasked sublane stores) or cover the full Ho*Wo extent."""
    target = int(min(2048, max(256, (4 * 1024 * 1024) // max(1, 2 * k_lanes))))
    cand = [d for d in range(1, ho + 1)
            if ho % d == 0 and d * wo <= target and (d * wo) % 8 == 0]
    return max(cand) if cand else ho


# ----------------------------------------------------------------------------
# Pallas kernel: tap-folded conv matmul + folded BN affine (+ ReLU)
# ----------------------------------------------------------------------------
def _stem_stage_kernel(windows, tr, wo, apply_relu,
                       x_ref, w_ref, scale_ref, bias_ref, o_ref):
    # x_ref:     (1, 1, tr+halo, wc, C)  bf16  halo'd input row slab
    # w_ref:     (K, cb)                 bf16  tap-folded weights (one Cout block)
    # scale_ref: (1, cb)                 f32   gamma / sqrt(var + eps)
    # bias_ref:  (1, cb)                 f32   beta + (conv_bias - mean) * scale
    # o_ref:     (1, tr*wo, cb)          bf16  flat pixels-major output block
    pieces = [x_ref[0, 0, dr:dr + tr, dc:dc + wo, lo:hi]
              for (dr, dc, lo, hi) in windows]
    lhs = pieces[0] if len(pieces) == 1 else jnp.concatenate(pieces, axis=-1)
    lhs = lhs.reshape(tr * wo, lhs.shape[-1])
    acc = jnp.dot(lhs, w_ref[...], preferred_element_type=jnp.float32)
    y = acc * scale_ref[...] + bias_ref[...]
    if apply_relu:
        y = jnp.maximum(y, 0.0)
    o_ref[0] = y.astype(o_ref.dtype)


# ----------------------------------------------------------------------------
# One Conv2d(k=3, pad=1, stride) + BatchNorm2d + optional ReLU stage
# ----------------------------------------------------------------------------
def conv3x3_bn_act(x_nhwc, w_hwio, conv_bias, gamma, beta, mean, var, *,
                   stride, apply_relu, eps=1e-5):
    """`x_nhwc` is bf16 NHWC whose channel count may exceed w_hwio's Cin (extra
    channels are zero padding from the previous stage).  Returns bf16 NHWC with
    channels padded to a multiple of 128."""
    N, H, W, Cs = x_nhwc.shape
    Cin, Cout = w_hwio.shape[2], w_hwio.shape[3]
    assert Cs >= Cin
    Ho = (H + 2 - 3) // stride + 1
    Wo = (W + 2 - 3) // stride + 1
    Cp = _round_up(Cout, 128)
    cb = 256 if Cp % 256 == 0 else 128     # 128 fills v5e MXU; 256 on v6e/v7x when it divides
    ncb = Cp // cb

    # Zero-pad weight Cin rows to the stored (lane-padded) channel count.
    wp = jnp.pad(w_hwio.astype(jnp.float32),
                 ((0, 0), (0, 0), (0, Cs - Cin), (0, 0)))

    if stride == 2:
        hr, wc = Ho + 1, Wo + 1
        xp = jnp.pad(x_nhwc,
                     ((0, 0), (1, 2 * hr - 1 - H), (1, 2 * wc - 1 - W), (0, 0)))
        # space-to-depth: phases packed on the channel (lane) axis so one
        # contiguous row slab per output row block carries all 9 taps' data.
        packed = xp.reshape(N, hr, 2, wc, 2, Cs).transpose(0, 1, 3, 2, 4, 5)
        packed = packed.reshape(N, hr, wc, 4 * Cs)
        halo = 1
        if 4 * Cs <= 128:
            # Small Cin (stage 1): fold all taps into one K = 16*Cin matmul
            # using 4 full phase windows; unused phase slots -> zero weights.
            K = 16 * Cs
            wf = jnp.zeros((2, 2, 4, Cs, Cout), jnp.float32)
            for kh in range(3):
                for kw in range(3):
                    dr, pr = divmod(kh, 2)
                    dc, pc = divmod(kw, 2)
                    wf = wf.at[dr, dc, pr * 2 + pc].set(wp[kh, kw])
            wf = wf.reshape(K, Cout)
            windows = tuple((dr, dc, 0, 4 * Cs)
                            for dr in range(2) for dc in range(2))
        else:
            # 128-aligned Cin: 9 lane-block tap slices, one K = 9*Cin matmul.
            K = 9 * Cs
            wf = wp.reshape(K, Cout)
            windows = tuple(
                (kh // 2, kw // 2,
                 ((kh % 2) * 2 + kw % 2) * Cs,
                 ((kh % 2) * 2 + kw % 2 + 1) * Cs)
                for kh in range(3) for kw in range(3))
    else:  # stride == 1
        hr, wc = H + 2, W + 2
        packed = jnp.pad(x_nhwc, ((0, 0), (1, 1), (1, 1), (0, 0)))
        halo = 2
        K = 9 * Cs
        wf = wp.reshape(K, Cout)
        windows = tuple((kh, kw, 0, Cs) for kh in range(3) for kw in range(3))

    # Folded BN affine (conv bias absorbed), channel-pad to lane-dense Cp.
    scale = gamma / jnp.sqrt(var + eps)
    bias = beta + (conv_bias - mean) * scale
    wf = jnp.pad(wf, ((0, 0), (0, Cp - Cout))).astype(jnp.bfloat16)
    scale = jnp.pad(scale, (0, Cp - Cout)).reshape(1, Cp).astype(jnp.float32)
    bias = jnp.pad(bias, (0, Cp - Cout)).reshape(1, Cp).astype(jnp.float32)

    # Halo-duplicated row slabs: one contiguous (tr+halo)-row window per output
    # row block, so only a small auto-pipelined slab is VMEM resident.
    tr = _pick_row_tile(Ho, Wo, K)
    nrb = Ho // tr
    rows_blk = tr + halo
    row_idx = np.arange(nrb)[:, None] * tr + np.arange(rows_blk)[None, :]
    x_slabs = packed[:, row_idx]            # (N, nrb, rows_blk, wc, C)
    Cl = x_slabs.shape[-1]
    m_blk = tr * Wo

    kern = functools.partial(_stem_stage_kernel, windows, tr, Wo, apply_relu)
    flops = 2 * N * Ho * Wo * K * Cp
    bytes_acc = (x_slabs.size * 2 + wf.size * 2
                 + (scale.size + bias.size) * 4 + N * Ho * Wo * Cp * 2)

    def _call(buffer_invariant):
        def spec(shape, index_map, invariant):
            if invariant and buffer_invariant and hasattr(pl, "Buffered"):
                return pl.BlockSpec(shape, index_map,
                                    pipeline_mode=pl.Buffered(1))
            return pl.BlockSpec(shape, index_map)

        return pl.pallas_call(
            kern,
            out_shape=jax.ShapeDtypeStruct((N, Ho * Wo, Cp), jnp.bfloat16),
            grid_spec=pltpu.PrefetchScalarGridSpec(
                num_scalar_prefetch=0,
                grid=(N, nrb, ncb),
                in_specs=[
                    pl.BlockSpec((1, 1, rows_blk, wc, Cl),
                                 lambda n, r, c: (n, r, 0, 0, 0)),
                    spec((K, cb), lambda n, r, c: (0, c), ncb == 1),
                    spec((1, cb), lambda n, r, c: (0, c), ncb == 1),
                    spec((1, cb), lambda n, r, c: (0, c), ncb == 1),
                ],
                out_specs=pl.BlockSpec((1, m_blk, cb),
                                       lambda n, r, c: (n, r, c)),
            ),
            compiler_params=pltpu.CompilerParams(
                dimension_semantics=("parallel", "parallel", "parallel"),
                vmem_limit_bytes=_vmem_limit_bytes()),
            cost_estimate=pl.CostEstimate(
                flops=flops, bytes_accessed=bytes_acc, transcendentals=0),
        )(x_slabs, wf, scale, bias)

    try:
        out = _call(True)
    except Exception:
        # pl.Buffered(1) pipeline_mode unsupported -> default double buffering.
        out = _call(False)

    return out.reshape(N, Ho, Wo, Cp)


# ----------------------------------------------------------------------------
# Stem module: parameter construction + forward
# ----------------------------------------------------------------------------
def init_stem_params(key, in_dim, out_dim):
    """Deterministic synthetic parameters (shapes follow Stem.__init__)."""
    chans = [in_dim, out_dim // 8, out_dim // 4, out_dim // 2, out_dim, out_dim]
    params = []
    for li in range(5):
        cin, cout = chans[li], chans[li + 1]
        key, kw, kb, kg, kbt, km, kv = jax.random.split(key, 7)
        w = 0.05 * jax.random.normal(kw, (3, 3, cin, cout), jnp.float32)  # HWIO
        b = 0.1 * jax.random.normal(kb, (cout,), jnp.float32)             # conv bias
        gamma = 1.0 + 0.1 * jax.random.normal(kg, (cout,), jnp.float32)
        beta = 0.1 * jax.random.normal(kbt, (cout,), jnp.float32)
        mean = 0.1 * jax.random.normal(km, (cout,), jnp.float32)
        var = jax.random.uniform(kv, (cout,), jnp.float32, 0.5, 1.5)
        params.append(dict(w=w, b=b, gamma=gamma, beta=beta, mean=mean, var=var))
    return params


STRIDES = (2, 2, 2, 2, 1)
RELU = (True, True, True, True, False)   # last stage: Conv + BN only


def stem_forward(x_nchw, params):
    """Forward pass matching Stem.forward. Input/output are NCHW like PyTorch."""
    x = jnp.transpose(x_nchw, (0, 2, 3, 1)).astype(jnp.bfloat16)  # NCHW -> NHWC
    for p, s, r in zip(params, STRIDES, RELU):
        x = conv3x3_bn_act(x, p["w"], p["b"], p["gamma"], p["beta"],
                           p["mean"], p["var"], stride=s, apply_relu=r)
    cout = params[-1]["w"].shape[-1]
    x = x[..., :cout].astype(jnp.float32)    # drop lane padding once, at the end
    return jnp.transpose(x, (0, 3, 1, 2))    # NHWC -> NCHW


# ----------------------------------------------------------------------------
# Pure-JAX reference (for correctness check)
# ----------------------------------------------------------------------------
def stem_reference(x_nchw, params, eps=1e-5):
    x = jnp.transpose(x_nchw, (0, 2, 3, 1))
    for p, s, r in zip(params, STRIDES, RELU):
        y = lax.conv_general_dilated(
            x, p["w"], window_strides=(s, s), padding=((1, 1), (1, 1)),
            dimension_numbers=("NHWC", "HWIO", "NHWC")) + p["b"]
        scale = p["gamma"] / jnp.sqrt(p["var"] + eps)
        y = y * scale + (p["beta"] - p["mean"] * scale)
        x = jnp.maximum(y, 0.0) if r else y
    return jnp.transpose(x, (0, 3, 1, 2))


if __name__ == "__main__":
    key = jax.random.PRNGKey(0)
    k_params, k_x = jax.random.split(key)

    # Small shapes consistent with the module: NCHW input, in_dim=4, out_dim=32.
    N, in_dim, out_dim, img = 2, 4, 32, 16
    params = init_stem_params(k_params, in_dim, out_dim)
    x = jax.random.normal(k_x, (N, in_dim, img, img), jnp.float32)

    out = jax.block_until_ready(stem_forward(x, params))
    ref = jax.block_until_ready(stem_reference(x, params))

    assert out.shape == (N, out_dim, img // 16, img // 16), out.shape
    # bf16 matmul inputs / bf16 inter-stage activations with f32 accumulation.
    np.testing.assert_allclose(np.asarray(out), np.asarray(ref),
                               rtol=2e-2, atol=2e-2)
    print("KERNEL_OK")
</pallas_src>

<mosaic_0001>
module attributes {stable_mosaic.version = 11 : i64} {
  func.func @_stem_stage_kernel(%arg0: i32, %arg1: i32, %arg2: i32, %arg3: memref<1x1x9x9x16xbf16, #tpu.memory_space<vmem>>, %arg4: memref<64x128xbf16, #tpu.memory_space<vmem>>, %arg5: memref<1x128xf32, #tpu.memory_space<vmem>>, %arg6: memref<1x128xf32, #tpu.memory_space<vmem>>, %arg7: memref<1x64x128xbf16, #tpu.memory_space<vmem>>) attributes {dimension_semantics = [#tpu.dimension_semantics<parallel>, #tpu.dimension_semantics<parallel>, #tpu.dimension_semantics<parallel>], iteration_bounds = array<i64: 2, 1, 1>, scalar_prefetch = 0 : i64, scratch_operands = 0 : i64, tpu.core_type = #tpu.core_type<tc>, window_params = [{transform_indices = @transform_0, window_bounds = array<i64: 1, 1, 9, 9, 16>}, {pipeline_mode = #tpu.pipeline_mode<synchronous>, transform_indices = @transform_1, window_bounds = array<i64: 64, 128>}, {pipeline_mode = #tpu.pipeline_mode<synchronous>, transform_indices = @transform_2, window_bounds = array<i64: 1, 128>}, {pipeline_mode = #tpu.pipeline_mode<synchronous>, transform_indices = @transform_3, window_bounds = array<i64: 1, 128>}, {transform_indices = @transform_4, window_bounds = array<i64: 1, 64, 128>}]} {
    %c0 = arith.constant 0 : index
    %c0_0 = arith.constant 0 : index
    %c0_1 = arith.constant 0 : index
    %c0_2 = arith.constant 0 : index
    %c0_3 = arith.constant 0 : index
    %0 = vector.load %arg3[%c0, %c0_0, %c0_1, %c0_2, %c0_3] : memref<1x1x9x9x16xbf16, #tpu.memory_space<vmem>>, vector<1x1x8x8x16xbf16>
    %1 = vector.shape_cast %0 : vector<1x1x8x8x16xbf16> to vector<8x8x16xbf16>
    %c0_4 = arith.constant 0 : index
    %c0_5 = arith.constant 0 : index
    %c0_6 = arith.constant 0 : index
    %c1 = arith.constant 1 : index
    %c0_7 = arith.constant 0 : index
    %2 = vector.load %arg3[%c0_4, %c0_5, %c0_6, %c1, %c0_7] : memref<1x1x9x9x16xbf16, #tpu.memory_space<vmem>>, vector<1x1x8x8x16xbf16>
    %3 = vector.shape_cast %2 : vector<1x1x8x8x16xbf16> to vector<8x8x16xbf16>
    %c0_8 = arith.constant 0 : index
    %c0_9 = arith.constant 0 : index
    %c1_10 = arith.constant 1 : index
    %c0_11 = arith.constant 0 : index
    %c0_12 = arith.constant 0 : index
    %4 = vector.load %arg3[%c0_8, %c0_9, %c1_10, %c0_11, %c0_12] : memref<1x1x9x9x16xbf16, #tpu.memory_space<vmem>>, vector<1x1x8x8x16xbf16>
    %5 = vector.shape_cast %4 : vector<1x1x8x8x16xbf16> to vector<8x8x16xbf16>
    %c0_13 = arith.constant 0 : index
    %c0_14 = arith.constant 0 : index
    %c1_15 = arith.constant 1 : index
    %c1_16 = arith.constant 1 : index
    %c0_17 = arith.constant 0 : index
    %6 = vector.load %arg3[%c0_13, %c0_14, %c1_15, %c1_16, %c0_17] : memref<1x1x9x9x16xbf16, #tpu.memory_space<vmem>>, vector<1x1x8x8x16xbf16>
    %7 = vector.shape_cast %6 : vector<1x1x8x8x16xbf16> to vector<8x8x16xbf16>
    %8 = tpu.concatenate %1, %3, %5, %7 in 2 : vector<8x8x16xbf16>, vector<8x8x16xbf16>, vector<8x8x16xbf16>, vector<8x8x16xbf16> -> vector<8x8x64xbf16>
    %9 = vector.shape_cast %8 : vector<8x8x64xbf16> to vector<64x64xbf16>
    %c0_18 = arith.constant 0 : index
    %c0_19 = arith.constant 0 : index
    %10 = vector.load %arg4[%c0_18, %c0_19] : memref<64x128xbf16, #tpu.memory_space<vmem>>, vector<64x128xbf16>
    %cst = arith.constant dense<0.000000e+00> : vector<64x128xf32>
    %11 = tpu.matmul %9, %10, %cst {dimension_numbers = #tpu.dot_dimension_numbers<[1], [0], [0], [1], [0, 0, 1, 1], [], []>} : vector<64x64xbf16>, vector<64x128xbf16>, vector<64x128xf32> -> vector<64x128xf32>
    %c0_20 = arith.constant 0 : index
    %c0_21 = arith.constant 0 : index
    %12 = vector.load %arg5[%c0_20, %c0_21] : memref<1x128xf32, #tpu.memory_space<vmem>>, vector<1x128xf32>
    %13 = vector.broadcast %12 : vector<1x128xf32> to vector<64x128xf32>
    %14 = arith.mulf %11, %13 : vector<64x128xf32>
    %c0_22 = arith.constant 0 : index
    %c0_23 = arith.constant 0 : index
    %15 = vector.load %arg6[%c0_22, %c0_23] : memref<1x128xf32, #tpu.memory_space<vmem>>, vector<1x128xf32>
    %16 = vector.broadcast %15 : vector<1x128xf32> to vector<64x128xf32>
    %17 = arith.addf %14, %16 : vector<64x128xf32>
    %cst_24 = arith.constant 0.000000e+00 : f32
    %18 = vector.broadcast %cst_24 : f32 to vector<64x128xf32>
    %19 = arith.maximumf %17, %18 : vector<64x128xf32>
    %20 = arith.truncf %19 : vector<64x128xf32> to vector<64x128xbf16>
    %c0_25 = arith.constant 0 : index
    %c0_26 = arith.constant 0 : index
    %c0_27 = arith.constant 0 : index
    %21 = vector.load %arg7[%c0_25, %c0_26, %c0_27] : memref<1x64x128xbf16, #tpu.memory_space<vmem>>, vector<1x64x128xbf16>
    %22 = vector.shape_cast %21 : vector<1x64x128xbf16> to vector<64x128xbf16>
    %23 = vector.shape_cast %20 : vector<64x128xbf16> to vector<1x64x128xbf16>
    tpu.vector_store %arg7[%c0_25, %c0_26, %c0_27], %23 {strides = array<i32>} : memref<1x64x128xbf16, #tpu.memory_space<vmem>>, vector<1x64x128xbf16>,
    return
  }
  func.func @transform_0(%arg0: i32, %arg1: i32, %arg2: i32) -> (i32, i32, i32, i32, i32) {
    %c0_i32 = arith.constant 0 : i32
    %c0_i32_0 = arith.constant 0 : i32
    %c0_i32_1 = arith.constant 0 : i32
    %c0_i32_2 = arith.constant 0 : i32
    return %arg0, %arg1, %c0_i32, %c0_i32_0, %c0_i32_1 : i32, i32, i32, i32, i32
  }
  func.func @transform_1(%arg0: i32, %arg1: i32, %arg2: i32) -> (i32, i32) {
    %c0_i32 = arith.constant 0 : i32
    %c0_i32_0 = arith.constant 0 : i32
    return %c0_i32, %arg2 : i32, i32
  }
  func.func @transform_2(%arg0: i32, %arg1: i32, %arg2: i32) -> (i32, i32) {
    %c0_i32 = arith.constant 0 : i32
    %c0_i32_0 = arith.constant 0 : i32
    return %c0_i32, %arg2 : i32, i32
  }
  func.func @transform_3(%arg0: i32, %arg1: i32, %arg2: i32) -> (i32, i32) {
    %c0_i32 = arith.constant 0 : i32
    %c0_i32_0 = arith.constant 0 : i32
    return %c0_i32, %arg2 : i32, i32
  }
  func.func @transform_4(%arg0: i32, %arg1: i32, %arg2: i32) -> (i32, i32, i32) {
    %c0_i32 = arith.constant 0 : i32
    return %arg0, %arg1, %arg2 : i32, i32, i32
  }
}

module attributes {stable_mosaic.version = 11 : i64} {
  func.func @_stem_stage_kernel(%arg0: i32, %arg1: i32, %arg2: i32, %arg3: memref<1x1x9x9x16xbf16, #tpu.memory_space<vmem>>, %arg4: memref<64x128xbf16, #tpu.memory_space<vmem>>, %arg5: memref<1x128xf32, #tpu.memory_space<vmem>>, %arg6: memref<1x128xf32, #tpu.memory_space<vmem>>, %arg7: memref<1x64x128xbf16, #tpu.memory_space<vmem>>) attributes {dimension_semantics = [#tpu.dimension_semantics<parallel>, #tpu.dimension_semantics<parallel>, #tpu.dimension_semantics<parallel>], iteration_bounds = array<i64: 2, 1, 1>, scalar_prefetch = 0 : i64, scratch_operands = 0 : i64, tpu.core_type = #tpu.core_type<tc>, window_params = [{transform_indices = @transform_0, window_bounds = array<i64: 1, 1, 9, 9, 16>}, {transform_indices = @transform_1, window_bounds = array<i64: 64, 128>}, {transform_indices = @transform_2, window_bounds = array<i64: 1, 128>}, {transform_indices = @transform_3, window_bounds = array<i64: 1, 128>}, {transform_indices = @transform_4, window_bounds = array<i64: 1, 64, 128>}]} {
    %c0 = arith.constant 0 : index
    %c0_0 = arith.constant 0 : index
    %c0_1 = arith.constant 0 : index
    %c0_2 = arith.constant 0 : index
    %c0_3 = arith.constant 0 : index
    %0 = vector.load %arg3[%c0, %c0_0, %c0_1, %c0_2, %c0_3] : memref<1x1x9x9x16xbf16, #tpu.memory_space<vmem>>, vector<1x1x8x8x16xbf16>
    %1 = vector.shape_cast %0 : vector<1x1x8x8x16xbf16> to vector<8x8x16xbf16>
    %c0_4 = arith.constant 0 : index
    %c0_5 = arith.constant 0 : index
    %c0_6 = arith.constant 0 : index
    %c1 = arith.constant 1 : index
    %c0_7 = arith.constant 0 : index
    %2 = vector.load %arg3[%c0_4, %c0_5, %c0_6, %c1, %c0_7] : memref<1x1x9x9x16xbf16, #tpu.memory_space<vmem>>, vector<1x1x8x8x16xbf16>
    %3 = vector.shape_cast %2 : vector<1x1x8x8x16xbf16> to vector<8x8x16xbf16>
    %c0_8 = arith.constant 0 : index
    %c0_9 = arith.constant 0 : index
    %c1_10 = arith.constant 1 : index
    %c0_11 = arith.constant 0 : index
    %c0_12 = arith.constant 0 : index
    %4 = vector.load %arg3[%c0_8, %c0_9, %c1_10, %c0_11, %c0_12] : memref<1x1x9x9x16xbf16, #tpu.memory_space<vmem>>, vector<1x1x8x8x16xbf16>
    %5 = vector.shape_cast %4 : vector<1x1x8x8x16xbf16> to vector<8x8x16xbf16>
    %c0_13 = arith.constant 0 : index
    %c0_14 = arith.constant 0 : index
    %c1_15 = arith.constant 1 : index
    %c1_16 = arith.constant 1 : index
    %c0_17 = arith.constant 0 : index
    %6 = vector.load %arg3[%c0_13, %c0_14, %c1_15, %c1_16, %c0_17] : memref<1x1x9x9x16xbf16, #tpu.memory_space<vmem>>, vector<1x1x8x8x16xbf16>
    %7 = vector.shape_cast %6 : vector<1x1x8x8x16xbf16> to vector<8x8x16xbf16>
    %8 = tpu.concatenate %1, %3, %5, %7 in 2 : vector<8x8x16xbf16>, vector<8x8x16xbf16>, vector<8x8x16xbf16>, vector<8x8x16xbf16> -> vector<8x8x64xbf16>
    %9 = vector.shape_cast %8 : vector<8x8x64xbf16> to vector<64x64xbf16>
    %c0_18 = arith.constant 0 : index
    %c0_19 = arith.constant 0 : index
    %10 = vector.load %arg4[%c0_18, %c0_19] : memref<64x128xbf16, #tpu.memory_space<vmem>>, vector<64x128xbf16>
    %cst = arith.constant dense<0.000000e+00> : vector<64x128xf32>
    %11 = tpu.matmul %9, %10, %cst {dimension_numbers = #tpu.dot_dimension_numbers<[1], [0], [0], [1], [0, 0, 1, 1], [], []>} : vector<64x64xbf16>, vector<64x128xbf16>, vector<64x128xf32> -> vector<64x128xf32>
    %c0_20 = arith.constant 0 : index
    %c0_21 = arith.constant 0 : index
    %12 = vector.load %arg5[%c0_20, %c0_21] : memref<1x128xf32, #tpu.memory_space<vmem>>, vector<1x128xf32>
    %13 = vector.broadcast %12 : vector<1x128xf32> to vector<64x128xf32>
    %14 = arith.mulf %11, %13 : vector<64x128xf32>
    %c0_22 = arith.constant 0 : index
    %c0_23 = arith.constant 0 : index
    %15 = vector.load %arg6[%c0_22, %c0_23] : memref<1x128xf32, #tpu.memory_space<vmem>>, vector<1x128xf32>
    %16 = vector.broadcast %15 : vector<1x128xf32> to vector<64x128xf32>
    %17 = arith.addf %14, %16 : vector<64x128xf32>
    %cst_24 = arith.constant 0.000000e+00 : f32
    %18 = vector.broadcast %cst_24 : f32 to vector<64x128xf32>
    %19 = arith.maximumf %17, %18 : vector<64x128xf32>
    %20 = arith.truncf %19 : vector<64x128xf32> to vector<64x128xbf16>
    %c0_25 = arith.constant 0 : index
    %c0_26 = arith.constant 0 : index
    %c0_27 = arith.constant 0 : index
    %21 = vector.load %arg7[%c0_25, %c0_26, %c0_27] : memref<1x64x128xbf16, #tpu.memory_space<vmem>>, vector<1x64x128xbf16>
    %22 = vector.shape_cast %21 : vector<1x64x128xbf16> to vector<64x128xbf16>
    %23 = vector.shape_cast %20 : vector<64x128xbf16> to vector<1x64x128xbf16>
    tpu.vector_store %arg7[%c0_25, %c0_26, %c0_27], %23 {strides = array<i32>} : memref<1x64x128xbf16, #tpu.memory_space<vmem>>, vector<1x64x128xbf16>,
    return
  }
  func.func @transform_0(%arg0: i32, %arg1: i32, %arg2: i32) -> (i32, i32, i32, i32, i32) {
    %c0_i32 = arith.constant 0 : i32
    %c0_i32_0 = arith.constant 0 : i32
    %c0_i32_1 = arith.constant 0 : i32
    %c0_i32_2 = arith.constant 0 : i32
    return %arg0, %arg1, %c0_i32, %c0_i32_0, %c0_i32_1 : i32, i32, i32, i32, i32
  }
  func.func @transform_1(%arg0: i32, %arg1: i32, %arg2: i32) -> (i32, i32) {
    %c0_i32 = arith.constant 0 : i32
    %c0_i32_0 = arith.constant 0 : i32
    return %c0_i32, %arg2 : i32, i32
  }
  func.func @transform_2(%arg0: i32, %arg1: i32, %arg2: i32) -> (i32, i32) {
    %c0_i32 = arith.constant 0 : i32
    %c0_i32_0 = arith.constant 0 : i32
    return %c0_i32, %arg2 : i32, i32
  }
  func.func @transform_3(%arg0: i32, %arg1: i32, %arg2: i32) -> (i32, i32) {
    %c0_i32 = arith.constant 0 : i32
    %c0_i32_0 = arith.constant 0 : i32
    return %c0_i32, %arg2 : i32, i32
  }
  func.func @transform_4(%arg0: i32, %arg1: i32, %arg2: i32) -> (i32, i32, i32) {
    %c0_i32 = arith.constant 0 : i32
    return %arg0, %arg1, %arg2 : i32, i32, i32
  }
}

</mosaic_0001>

<llo_original>
// kernel: tpu_custom_call.1
$region0: #{tpu_custom_call.1}
  #allocation0 [shape = 'u32[]', space=smem, size = 0x4, offset = 0x4, fixed_abs, tag = 'smem constant byte address 0x4 - core index']
  #allocation1 [shape = 'u32[144,128]{1,0:T(1,128)}', space=vmem, size = 0x12000, scoped, tag = 'internal scratch']
  %s0 = inlined_call_operand.vmem [shape: bf16[2,1,9,9,16], index: 0, kind: input, shape index: {}]
  %s1 = inlined_call_operand.vmem [shape: bf16[64,128], index: 1, kind: input, shape index: {}]
  %s2 = inlined_call_operand.vmem [shape: f32[1,128], index: 2, kind: input, shape index: {}]
  %s3 = inlined_call_operand.vmem [shape: f32[1,128], index: 3, kind: input, shape index: {}]
  %s4 = inlined_call_operand.hbm [shape: bf16[2,64,128], index: 4, kind: output, shape index: {}]
  %s5 = sld [smem:[#allocation0]]
  $region49: #{tpu_custom_call.1} parent=0
    _
  %s7 = ssub.s32 1, %s5
  %s8 = scalar_select 0, %s7, %s5
  $region1: #{tpu_custom_call.1} parent=0
    #allocation2 [shape = 'u8[32768]{0}', space=vmem, size = 0x8000, scoped, tag = 'output window, operand 0']
    #allocation3 [shape = 's32[2]{0}', space=sflag, size = 0x8, scoped, tag = 'scoped memory for tpu_custom_call.1']
    %9 = vsyncpa [#allocation3], 0
    %s10 = scalar_lea.sflag [#allocation3], 1
    %11 = vsyncpa %s10, 0
    loop: start=0, step=1, limit=4
    $region2: #{tpu_custom_call.1} parent=1 // loop_pre_header
      _
    $region3: #{tpu_custom_call.1} parent=1 // loop_header
      %s13 = sphi 0, %s17
      %p14 = scmp.ge.s32.totalorder %s13, 4
      %s20 = sphi 0, %s39
      %s21 = sphi 0, %s35
      %s22 = sphi 0, %s31
      %s23 = sphi 0, %s20
      %s24 = sphi 0, %s21
      %s25 = sphi 0, %s22
      %s26 = sphi 0, %s23
      %s27 = sphi 0, %s24
      %s28 = sphi 0, %s25
      %s44 = sphi 0, %s46
      %s47 = sphi 0, %s44
      %s48 = sphi 0, %s47
      %s64 = sphi 0, %s48
      %s70 = sphi 0, %s72
      %s73 = sphi 0, %s70
      %s74 = sphi 0, %s73
      %s90 = sphi 0, %s74
      %s96 = sphi 0, %s98
      %s99 = sphi 0, %s96
      %s100 = sphi 0, %s99
      %s116 = sphi 0, %s100
      %s122 = sphi 0, %s124
      %s125 = sphi 0, %s122
      %s126 = sphi 0, %s125
      %s142 = sphi 0, %s126
      %s152 = sphi 0, %s154
      %s155 = sphi 0, %s152
      %s156 = sphi 0, %s155
      %s172 = sphi 0, %s156
    $region4: #{tpu_custom_call.1} parent=1 // loop_header_branch
      %16 = sbr.rel (%p14) target = $region8
    $region5: #{tpu_custom_call.1} parent=1 // loop_body
      %s18 = ssub.s32 %s13, 1
      %s19 = ssub.s32 %s13, 2
      %s29 = sadd.s32 1, %s22
      %p30 = scmp.ge.s32.totalorder %s29, 1
      %s31 = scalar_select %p30, 0, %s29
      %s32 = sadd.s32 1, %s21
      %s33 = scalar_select %p30, %s32, %s21
      %p34 = scmp.ge.s32.totalorder %s33, 1
      %s35 = scalar_select %p34, 0, %s33
      %s36 = sadd.s32 1, %s20
      %s37 = scalar_select %p34, %s36, %s20
      %p38 = scmp.ge.s32.totalorder %s37, 2
      %s39 = scalar_select %p38, 0, %s37
      %s40 = ssub.s32 %s20, %s39
      %s41 = ssub.s32 %s21, %s35
      %s42 = sor.u32 %s40, %s41
      %p43 = scmp.eq.s32.totalorder %s42, 0
      %s45 = sadd.s32 %s44, 1
      %s46 = scalar_select %p43, %s44, %s45
      %p49 = pneg %p43
      %p50 = scmp.eq.s32.totalorder %s13, 1
      %p51 = por %p49, %p50
      %p52 = scmp.ne.s32.totalorder %s44, %s47
      %p53 = scmp.eq.s32.totalorder %s13, 0
      %p54 = por %p52, %p53
      %p55 = scmp.ne.s32.totalorder %s44, %s47
      %p56 = scmp.eq.s32.totalorder %s18, 1
      %p57 = por %p55, %p56
      %p58 = scmp.ne.s32.totalorder %s47, %s48
      %p59 = scmp.eq.s32.totalorder %s18, 0
      %p60 = por %p58, %p59
      %p61 = scmp.ne.s32.totalorder %s47, %s48
      %p62 = scmp.eq.s32.totalorder %s19, 1
      %p63 = por %p61, %p62
      %p65 = scmp.ne.s32.totalorder %s48, %s64
      %p66 = scmp.eq.s32.totalorder %s19, 0
      %p67 = por %p65, %p66
      %s68 = ssub.s32 %s22, %s31
      %p69 = scmp.eq.s32.totalorder %s68, 0
      %s71 = sadd.s32 %s70, 1
      %s72 = scalar_select %p69, %s70, %s71
      %p75 = pneg %p69
      %p76 = scmp.eq.s32.totalorder %s13, 1
      %p77 = por %p75, %p76
      %p78 = scmp.ne.s32.totalorder %s70, %s73
      %p79 = scmp.eq.s32.totalorder %s13, 0
      %p80 = por %p78, %p79
      %p81 = scmp.ne.s32.totalorder %s70, %s73
      %p82 = scmp.eq.s32.totalorder %s18, 1
      %p83 = por %p81, %p82
      %p84 = scmp.ne.s32.totalorder %s73, %s74
      %p85 = scmp.eq.s32.totalorder %s18, 0
      %p86 = por %p84, %p85
      %p87 = scmp.ne.s32.totalorder %s73, %s74
      %p88 = scmp.eq.s32.totalorder %s19, 1
      %p89 = por %p87, %p88
      %p91 = scmp.ne.s32.totalorder %s74, %s90
      %p92 = scmp.eq.s32.totalorder %s19, 0
      %p93 = por %p91, %p92
      %s94 = ssub.s32 %s22, %s31
      %p95 = scmp.eq.s32.totalorder %s94, 0
      %s97 = sadd.s32 %s96, 1
      %s98 = scalar_select %p95, %s96, %s97
      %p101 = pneg %p95
      %p102 = scmp.eq.s32.totalorder %s13, 1
      %p103 = por %p101, %p102
      %p104 = scmp.ne.s32.totalorder %s96, %s99
      %p105 = scmp.eq.s32.totalorder %s13, 0
      %p106 = por %p104, %p105
      %p107 = scmp.ne.s32.totalorder %s96, %s99
      %p108 = scmp.eq.s32.totalorder %s18, 1
      %p109 = por %p107, %p108
      %p110 = scmp.ne.s32.totalorder %s99, %s100
      %p111 = scmp.eq.s32.totalorder %s18, 0
      %p112 = por %p110, %p111
      %p113 = scmp.ne.s32.totalorder %s99, %s100
      %p114 = scmp.eq.s32.totalorder %s19, 1
      %p115 = por %p113, %p114
      %p117 = scmp.ne.s32.totalorder %s100, %s116
      %p118 = scmp.eq.s32.totalorder %s19, 0
      %p119 = por %p117, %p118
      %s120 = ssub.s32 %s22, %s31
      %p121 = scmp.eq.s32.totalorder %s120, 0
      %s123 = sadd.s32 %s122, 1
      %s124 = scalar_select %p121, %s122, %s123
      %p127 = pneg %p121
      %p128 = scmp.eq.s32.totalorder %s13, 1
      %p129 = por %p127, %p128
      %p130 = scmp.ne.s32.totalorder %s122, %s125
      %p131 = scmp.eq.s32.totalorder %s13, 0
      %p132 = por %p130, %p131
      %p133 = scmp.ne.s32.totalorder %s122, %s125
      %p134 = scmp.eq.s32.totalorder %s18, 1
      %p135 = por %p133, %p134
      %p136 = scmp.ne.s32.totalorder %s125, %s126
      %p137 = scmp.eq.s32.totalorder %s18, 0
      %p138 = por %p136, %p137
      %p139 = scmp.ne.s32.totalorder %s125, %s126
      %p140 = scmp.eq.s32.totalorder %s19, 1
      %p141 = por %p139, %p140
      %p143 = scmp.ne.s32.totalorder %s126, %s142
      %p144 = scmp.eq.s32.totalorder %s19, 0
      %p145 = por %p143, %p144
      %s146 = ssub.s32 %s20, %s39
      %s147 = ssub.s32 %s21, %s35
      %s148 = sor.u32 %s146, %s147
      %s149 = ssub.s32 %s22, %s31
      %s150 = sor.u32 %s148, %s149
      %p151 = scmp.eq.s32.totalorder %s150, 0
      %s153 = sadd.s32 %s152, 1
      %s154 = scalar_select %p151, %s152, %s153
      %p157 = pneg %p151
      %p158 = scmp.eq.s32.totalorder %s13, 1
      %p159 = por %p157, %p158
      %p160 = scmp.ne.s32.totalorder %s152, %s155
      %p161 = scmp.eq.s32.totalorder %s13, 0
      %p162 = por %p160, %p161
      %p163 = scmp.ne.s32.totalorder %s152, %s155
      %p164 = scmp.eq.s32.totalorder %s18, 1
      %p165 = por %p163, %p164
      %p166 = scmp.ne.s32.totalorder %s155, %s156
      %p167 = scmp.eq.s32.totalorder %s18, 0
      %p168 = por %p166, %p167
      %p169 = scmp.ne.s32.totalorder %s155, %s156
      %p170 = scmp.eq.s32.totalorder %s19, 1
      %p171 = por %p169, %p170
      %p173 = scmp.ne.s32.totalorder %s156, %s172
      %p174 = scmp.eq.s32.totalorder %s19, 0
      %p175 = por %p173, %p174
      %p176 = scmp.le.s32.totalorder 1, %s13
      %p177 = scmp.lt.s32.totalorder %s13, 3
      %p178 = pnand %p176, %p177
      %p179 = pneg %p178
      // Predicated region
      $region9: #{tpu_custom_call.1} parent=5 // pred_check
        _
      $region10: #{tpu_custom_call.1} parent=5 // pred_check_branch
        %181 = sbr.rel (%p178) target = $region12
      $region11: #{tpu_custom_call.1} parent=5 // pred_region
        %s182 = ssub.s32 %s13, 1
        // Predicated region
        $region13: #{tpu_custom_call.1} parent=11 // pred_check
          %p183 = pneg %p86
        $region14: #{tpu_custom_call.1} parent=11 // pred_check_branch
          %185 = sbr.rel (%p183) target = $region16
        $region15: #{tpu_custom_call.1} parent=11 // pred_region
          %p186 = scmp.lt.s32.totalorder %s25, 0
          %s187 = scalar_select %p186, %s25, 0
          %s188 = smul.addr %s187, 4
          %s189 = scalar_lea.vmem %s1, %s188
        $region16: #{tpu_custom_call.1} parent=11 // pred_fallthru
          _
        // Predicated region
        $region17: #{tpu_custom_call.1} parent=11 // pred_check
          %p190 = pneg %p112
        $region18: #{tpu_custom_call.1} parent=11 // pred_check_branch
          %192 = sbr.rel (%p190) target = $region20
        $region19: #{tpu_custom_call.1} parent=11 // pred_region
          %p193 = scmp.lt.s32.totalorder %s25, 0
          %s194 = scalar_select %p193, %s25, 0
          %s195 = scalar_lea.vmem %s2, %s194
        $region20: #{tpu_custom_call.1} parent=11 // pred_fallthru
          _
        // Predicated region
        $region21: #{tpu_custom_call.1} parent=11 // pred_check
          %p196 = pneg %p138
        $region22: #{tpu_custom_call.1} parent=11 // pred_check_branch
          %198 = sbr.rel (%p196) target = $region24
        $region23: #{tpu_custom_call.1} parent=11 // pred_region
          %p199 = scmp.lt.s32.totalorder %s25, 0
          %s200 = scalar_select %p199, %s25, 0
          %s201 = scalar_lea.vmem %s3, %s200
        $region24: #{tpu_custom_call.1} parent=11 // pred_fallthru
          _
      $region12: #{tpu_custom_call.1} parent=5 // pred_fallthru
        _
      %p202 = scmp.lt.s32.totalorder %s13, 2
      // Predicated region
      $region25: #{tpu_custom_call.1} parent=5 // pred_check
        %p203 = pneg %p202
      $region26: #{tpu_custom_call.1} parent=5 // pred_check_branch
        %205 = sbr.rel (%p203) target = $region28
      $region27: #{tpu_custom_call.1} parent=5 // pred_region
        // Predicated region
        $region29: #{tpu_custom_call.1} parent=27 // pred_check
          %p206 = pneg %p54
        $region30: #{tpu_custom_call.1} parent=27 // pred_check_branch
          %208 = sbr.rel (%p206) target = $region32
        $region31: #{tpu_custom_call.1} parent=27 // pred_region
          %p209 = scmp.lt.s32.totalorder %s20, 1
          %s210 = scalar_select %p209, %s20, 1
          %p211 = scmp.lt.s32.totalorder %s21, 0
          %s212 = scalar_select %p211, %s21, 0
          %s213 = smul.addr %s212, 18
          %s214 = smul.addr %s210, 18
          %s215 = sadd.s32 %s213, %s214
          %s216 = smul.addr %s215, 4
          %s217 = scalar_lea.vmem %s0, %s216
        $region32: #{tpu_custom_call.1} parent=27 // pred_fallthru
          _
      $region28: #{tpu_custom_call.1} parent=5 // pred_fallthru
        _
      %p218 = scmp.le.s32.totalorder 1, %s13
      %p219 = scmp.lt.s32.totalorder %s13, 3
      %p220 = pnand %p218, %p219
      %p221 = pneg %p220
      // Predicated region
      $region33: #{tpu_custom_call.1} parent=5 // pred_check
        _
      $region34: #{tpu_custom_call.1} parent=5 // pred_check_branch
        %223 = sbr.rel (%p220) target = $region36
      $region35: #{tpu_custom_call.1} parent=5 // pred_region
        %s224 = ssub.s32 %s13, 1
        %p225 = scmp.lt.s32.totalorder %s23, 1
        %s226 = scalar_select %p225, %s23, 1
        %p227 = scmp.lt.s32.totalorder %s24, 0
        %s228 = scalar_select %p227, %s24, 0
        %s229 = smul.addr %s228, 18
        %s230 = smul.addr %s226, 18
        %s231 = sadd.s32 %s229, %s230
        %s232 = smul.addr %s231, 4
        %s233 = scalar_lea.vmem %s0, %s232
        %p234 = pneg %p60
        %p235 = pneg %p57
        %p236 = scmp.lt.s32.totalorder %s25, 0
        %s237 = scalar_select %p236, %s25, 0
        %s238 = smul.addr %s237, 4
        %s239 = scalar_lea.vmem %s1, %s238
        %p240 = pneg %p86
        %p241 = pneg %p83
        %p242 = scmp.lt.s32.totalorder %s25, 0
        %s243 = scalar_select %p242, %s25, 0
        %s244 = scalar_lea.vmem %s2, %s243
        %p245 = pneg %p112
        %p246 = pneg %p109
        %p247 = scmp.lt.s32.totalorder %s25, 0
        %s248 = scalar_select %p247, %s25, 0
        %s249 = scalar_lea.vmem %s3, %s248
        %p250 = pneg %p138
        %p251 = pneg %p135
        %p252 = pneg %p168
        %p253 = pneg %p165
        %s254 = sand.u32 %s155, 1
        %s255 = scalar_lea.sflag [#allocation3], %s254
        %s256 = sand.u32 %s155, 1
        %s257 = smul.addr %s256, 32
        %s258 = scalar_lea.vmem [#allocation2], %s257
        %p259 = scmp.lt.s32.totalorder %s23, 1
        %s260 = scalar_select %p259, %s23, 1
        %p261 = scmp.lt.s32.totalorder %s24, 0
        %s262 = scalar_select %p261, %s24, 0
        %s263 = smul.addr %s262, 18
        %s264 = smul.addr %s260, 18
        %s265 = sadd.s32 %s263, %s264
        %s266 = smul.addr %s265, 4
        %s267 = scalar_lea.vmem %s0, %s266
        %p268 = scmp.lt.s32.totalorder %s25, 0
        %s269 = scalar_select %p268, %s25, 0
        %s270 = smul.addr %s269, 4
        %s271 = scalar_lea.vmem %s1, %s270
        %p272 = scmp.lt.s32.totalorder %s25, 0
        %s273 = scalar_select %p272, %s25, 0
        %s274 = scalar_lea.vmem %s2, %s273
        %p275 = scmp.lt.s32.totalorder %s25, 0
        %s276 = scalar_select %p275, %s25, 0
        %s277 = scalar_lea.vmem %s3, %s276
        %s278 = smul.u32 8, %s24
        %v280 = vld [vmem:[%s267] sm:$0xf]
        %v281 = vld [vmem:[%s267 + $0x8] sm:$0xf]
        %v282 = vld [vmem:[%s267 + $0x10] sm:$0xf]
        %v283 = vld [vmem:[%s267 + $0x18] sm:$0xf]
        %v284 = vld [vmem:[%s267 + $0x20] sm:$0xf]
        %v285 = vld [vmem:[%s267 + $0x28] sm:$0xf]
        %v286 = vld [vmem:[%s267 + $0x30] sm:$0xf]
        %v287 = vld [vmem:[%s267 + $0x38] sm:$0xf]
        %v288 = vld [vmem:[%s267 + $0x4] sm:$0x1]
        %v289 = vld [vmem:[%s267 + $0xc] sm:$0x1]
        %v290 = vld [vmem:[%s267 + $0x14] sm:$0x1]
        %v291 = vld [vmem:[%s267 + $0x1c] sm:$0x1]
        %v292 = vld [vmem:[%s267 + $0x24] sm:$0x1]
        %v293 = vld [vmem:[%s267 + $0x2c] sm:$0x1]
        %v294 = vld [vmem:[%s267 + $0x34] sm:$0x1]
        %v295 = vld [vmem:[%s267 + $0x3c] sm:$0x1]
        %s296 = scalar_lea.vmem %s267, 8
        %v297 = vld [vmem:[%s296] sm:$0xf]
        %v298 = vld [vmem:[%s296 + $0x8] sm:$0xf]
        %v299 = vld [vmem:[%s296 + $0x10] sm:$0xf]
        %v300 = vld [vmem:[%s296 + $0x18] sm:$0xf]
        %v301 = vld [vmem:[%s296 + $0x20] sm:$0xf]
        %v302 = vld [vmem:[%s296 + $0x28] sm:$0xf]
        %v303 = vld [vmem:[%s296 + $0x30] sm:$0xf]
        %v304 = vld [vmem:[%s296 + $0x38] sm:$0xf]
        %v305 = vld [vmem:[%s296 + $0x4] sm:$0x1]
        %v306 = vld [vmem:[%s296 + $0xc] sm:$0x1]
        %v307 = vld [vmem:[%s296 + $0x14] sm:$0x1]
        %v308 = vld [vmem:[%s296 + $0x1c] sm:$0x1]
        %v309 = vld [vmem:[%s296 + $0x24] sm:$0x1]
        %v310 = vld [vmem:[%s296 + $0x2c] sm:$0x1]
        %v311 = vld [vmem:[%s296 + $0x34] sm:$0x1]
        %v312 = vld [vmem:[%s296 + $0x3c] sm:$0x1]
        %v329 = vunpack.c.l.b16 %v280
        %v330 = vunpack.c.l.b16 %v288
        %v331 = vunpack.c.l.b16 %v281
        %v332 = vunpack.c.l.b16 %v289
        %v333 = vunpack.c.l.b16 %v282
        %v334 = vunpack.c.l.b16 %v290
        %v335 = vunpack.c.l.b16 %v283
        %v336 = vunpack.c.l.b16 %v291
        %v337 = vunpack.c.l.b16 %v284
        %v338 = vunpack.c.l.b16 %v292
        %v339 = vunpack.c.l.b16 %v285
        %v340 = vunpack.c.l.b16 %v293
        %v341 = vunpack.c.l.b16 %v286
        %v342 = vunpack.c.l.b16 %v294
        %v343 = vunpack.c.l.b16 %v287
        %v344 = vunpack.c.l.b16 %v295
        %v345 = vpack.c.b16 %v330, %v329
        %v346 = vpack.c.b16 %v332, %v331
        %v347 = vpack.c.b16 %v334, %v333
        %v348 = vpack.c.b16 %v336, %v335
        %v349 = vpack.c.b16 %v338, %v337
        %v350 = vpack.c.b16 %v340, %v339
        %v351 = vpack.c.b16 %v342, %v341
        %v352 = vpack.c.b16 %v344, %v343
        %v354 = vshrl.u32 %v345, 16
        %v356 = vshll.u32 %v345, 16
        %v358 = vrot.slane %v356, 1
        %v359 = vor.u32 %v354, %v358
        %v361 = vshrl.u32 %v346, 16
        %v363 = vshll.u32 %v346, 16
        %v365 = vrot.slane %v363, 1
        %v366 = vor.u32 %v361, %v365
        %v368 = vshrl.u32 %v347, 16
        %v370 = vshll.u32 %v347, 16
        %v372 = vrot.slane %v370, 1
        %v373 = vor.u32 %v368, %v372
        %v375 = vshrl.u32 %v348, 16
        %v377 = vshll.u32 %v348, 16
        %v379 = vrot.slane %v377, 1
        %v380 = vor.u32 %v375, %v379
        %v382 = vshrl.u32 %v349, 16
        %v384 = vshll.u32 %v349, 16
        %v386 = vrot.slane %v384, 1
        %v387 = vor.u32 %v382, %v386
        %v389 = vshrl.u32 %v350, 16
        %v391 = vshll.u32 %v350, 16
        %v393 = vrot.slane %v391, 1
        %v394 = vor.u32 %v389, %v393
        %v396 = vshrl.u32 %v351, 16
        %v398 = vshll.u32 %v351, 16
        %v400 = vrot.slane %v398, 1
        %v401 = vor.u32 %v396, %v400
        %v403 = vshrl.u32 %v352, 16
        %v405 = vshll.u32 %v352, 16
        %v407 = vrot.slane %v405, 1
        %v408 = vor.u32 %v403, %v407
        %409 = vrot.lane.b32.xlu0 %v359, 16
        %v410 = vpop.permute.xlu0 %409
        %411 = vrot.lane.b32.xlu0 %v366, 16
        %v412 = vpop.permute.xlu0 %411
        %413 = vrot.lane.b32.xlu0 %v373, 16
        %v414 = vpop.permute.xlu0 %413
        %415 = vrot.lane.b32.xlu0 %v380, 16
        %v416 = vpop.permute.xlu0 %415
        %417 = vrot.lane.b32.xlu0 %v387, 16
        %v418 = vpop.permute.xlu0 %417
        %419 = vrot.lane.b32.xlu0 %v394, 16
        %v420 = vpop.permute.xlu0 %419
        %421 = vrot.lane.b32.xlu0 %v401, 16
        %v422 = vpop.permute.xlu0 %421
        %423 = vrot.lane.b32.xlu0 %v408, 16
        %v424 = vpop.permute.xlu0 %423
        %v433 = vunpack.c.l.b16 %v297
        %v434 = vunpack.c.l.b16 %v298
        %v435 = vunpack.c.l.b16 %v299
        %v436 = vunpack.c.l.b16 %v300
        %v437 = vunpack.c.l.b16 %v301
        %v438 = vunpack.c.l.b16 %v302
        %v439 = vunpack.c.l.b16 %v303
        %v440 = vunpack.c.l.b16 %v304
        %v441 = vpack.c.b16 %v433, %v433
        %v442 = vpack.c.b16 %v434, %v434
        %v443 = vpack.c.b16 %v435, %v435
        %v444 = vpack.c.b16 %v436, %v436
        %v445 = vpack.c.b16 %v437, %v437
        %v446 = vpack.c.b16 %v438, %v438
        %v447 = vpack.c.b16 %v439, %v439
        %v448 = vpack.c.b16 %v440, %v440
        %449 = vrot.lane.b32.xlu0 %v441, 32
        %v450 = vpop.permute.xlu0 %449
        %451 = vrot.lane.b32.xlu0 %v442, 32
        %v452 = vpop.permute.xlu0 %451
        %453 = vrot.lane.b32.xlu0 %v443, 32
        %v454 = vpop.permute.xlu0 %453
        %455 = vrot.lane.b32.xlu0 %v444, 32
        %v456 = vpop.permute.xlu0 %455
        %457 = vrot.lane.b32.xlu0 %v445, 32
        %v458 = vpop.permute.xlu0 %457
        %459 = vrot.lane.b32.xlu0 %v446, 32
        %v460 = vpop.permute.xlu0 %459
        %461 = vrot.lane.b32.xlu0 %v447, 32
        %v462 = vpop.permute.xlu0 %461
        %463 = vrot.lane.b32.xlu0 %v448, 32
        %v464 = vpop.permute.xlu0 %463
        %v473 = vunpack.c.l.b16 %v305
        %v474 = vunpack.c.l.b16 %v306
        %v475 = vunpack.c.l.b16 %v307
        %v476 = vunpack.c.l.b16 %v308
        %v477 = vunpack.c.l.b16 %v309
        %v478 = vunpack.c.l.b16 %v310
        %v479 = vunpack.c.l.b16 %v311
        %v480 = vunpack.c.l.b16 %v312
        %v481 = vpack.c.b16 %v473, %v433
        %v482 = vpack.c.b16 %v474, %v434
        %v483 = vpack.c.b16 %v475, %v435
        %v484 = vpack.c.b16 %v476, %v436
        %v485 = vpack.c.b16 %v477, %v437
        %v486 = vpack.c.b16 %v478, %v438
        %v487 = vpack.c.b16 %v479, %v439
        %v488 = vpack.c.b16 %v480, %v440
        %v490 = vshrl.u32 %v481, 16
        %v492 = vshll.u32 %v481, 16
        %v494 = vrot.slane %v492, 1
        %v495 = vor.u32 %v490, %v494
        %v497 = vshrl.u32 %v482, 16
        %v499 = vshll.u32 %v482, 16
        %v501 = vrot.slane %v499, 1
        %v502 = vor.u32 %v497, %v501
        %v504 = vshrl.u32 %v483, 16
        %v506 = vshll.u32 %v483, 16
        %v508 = vrot.slane %v506, 1
        %v509 = vor.u32 %v504, %v508
        %v511 = vshrl.u32 %v484, 16
        %v513 = vshll.u32 %v484, 16
        %v515 = vrot.slane %v513, 1
        %v516 = vor.u32 %v511, %v515
        %v518 = vshrl.u32 %v485, 16
        %v520 = vshll.u32 %v485, 16
        %v522 = vrot.slane %v520, 1
        %v523 = vor.u32 %v518, %v522
        %v525 = vshrl.u32 %v486, 16
        %v527 = vshll.u32 %v486, 16
        %v529 = vrot.slane %v527, 1
        %v530 = vor.u32 %v525, %v529
        %v532 = vshrl.u32 %v487, 16
        %v534 = vshll.u32 %v487, 16
        %v536 = vrot.slane %v534, 1
        %v537 = vor.u32 %v532, %v536
        %v539 = vshrl.u32 %v488, 16
        %v541 = vshll.u32 %v488, 16
        %v543 = vrot.slane %v541, 1
        %v544 = vor.u32 %v539, %v543
        %545 = vrot.lane.b32.xlu0 %v495, 48
        %v546 = vpop.permute.xlu0 %545
        %547 = vrot.lane.b32.xlu0 %v502, 48
        %v548 = vpop.permute.xlu0 %547
        %549 = vrot.lane.b32.xlu0 %v509, 48
        %v550 = vpop.permute.xlu0 %549
        %551 = vrot.lane.b32.xlu0 %v516, 48
        %v552 = vpop.permute.xlu0 %551
        %553 = vrot.lane.b32.xlu0 %v523, 48
        %v554 = vpop.permute.xlu0 %553
        %555 = vrot.lane.b32.xlu0 %v530, 48
        %v556 = vpop.permute.xlu0 %555
        %557 = vrot.lane.b32.xlu0 %v537, 48
        %v558 = vpop.permute.xlu0 %557
        %559 = vrot.lane.b32.xlu0 %v544, 48
        %v560 = vpop.permute.xlu0 %559
        %vm561 = vcmask 130048
        %v564 = vsel %vm561, %v280, %v410
        %v567 = vsel %vm561, %v281, %v412
        %v570 = vsel %vm561, %v282, %v414
        %v573 = vsel %vm561, %v283, %v416
        %v576 = vsel %vm561, %v284, %v418
        %v579 = vsel %vm561, %v285, %v420
        %v582 = vsel %vm561, %v286, %v422
        %v585 = vsel %vm561, %v287, %v424
        %vm586 = vcmask 261120
        %v588 = vsel %vm586, %v564, %v450
        %v590 = vsel %vm586, %v567, %v452
        %v592 = vsel %vm586, %v570, %v454
        %v594 = vsel %vm586, %v573, %v456
        %v596 = vsel %vm586, %v576, %v458
        %v598 = vsel %vm586, %v579, %v460
        %v600 = vsel %vm586, %v582, %v462
        %v602 = vsel %vm586, %v585, %v464
        %vm603 = vcmask 392192
        %v605 = vsel %vm603, %v588, %v546
        %v607 = vsel %vm603, %v590, %v548
        %v609 = vsel %vm603, %v592, %v550
        %v611 = vsel %vm603, %v594, %v552
        %v613 = vsel %vm603, %v596, %v554
        %v615 = vsel %vm603, %v598, %v556
        %v617 = vsel %vm603, %v600, %v558
        %v619 = vsel %vm603, %v602, %v560
        %v620 = vld [vmem:[%s271] sm:$0xf]
        %v621 = vld [vmem:[%s271 + $0x4] sm:$0xf]
        %v622 = vld [vmem:[%s271 + $0x8] sm:$0xf]
        %v623 = vld [vmem:[%s271 + $0xc] sm:$0xf]
        %v624 = vld [vmem:[%s271 + $0x10] sm:$0xf]
        %v625 = vld [vmem:[%s271 + $0x14] sm:$0xf]
        %v626 = vld [vmem:[%s271 + $0x18] sm:$0xf]
        %v627 = vld [vmem:[%s271 + $0x1c] sm:$0xf]
        %v636 = vunpack.c.l.b16 %v605
        %v637 = vunpack.c.l.b16 %v607
        %v638 = vunpack.c.l.b16 %v609
        %v639 = vunpack.c.l.b16 %v611
        %v640 = vunpack.c.l.b16 %v613
        %v641 = vunpack.c.l.b16 %v615
        %v642 = vunpack.c.l.b16 %v617
        %v643 = vunpack.c.l.b16 %v619
        %v644 = vpack.c.b16 %v637, %v636
        %v645 = vpack.c.b16 %v639, %v638
        %v646 = vpack.c.b16 %v641, %v640
        %v647 = vpack.c.b16 %v643, %v642
        %v656 = vunpack.c.l.b16 %v620
        %v657 = vunpack.c.l.b16 %v621
        %v658 = vunpack.c.l.b16 %v622
        %v659 = vunpack.c.l.b16 %v623
        %v660 = vunpack.c.l.b16 %v624
        %v661 = vunpack.c.l.b16 %v625
        %v662 = vunpack.c.l.b16 %v626
        %v663 = vunpack.c.l.b16 %v627
        %v664 = vpack.c.b16 %v657, %v656
        %v665 = vpack.c.b16 %v659, %v658
        %v666 = vpack.c.b16 %v661, %v660
        %v667 = vpack.c.b16 %v663, %v662
        %vm672 = vcmask 523264
        %v674 = vsel %vm672, %v644, 0
        %v677 = vsel %vm672, %v645, 0
        %v680 = vsel %vm672, %v646, 0
        %v683 = vsel %vm672, %v647, 0
        %685 = vmatprep.subr.bf16.mxu0 0
        %686 = vmatpush1.bf16.msra.mxu0 %v664
        %687 = vmatprep.subr.bf16.mxu0 0
        %688 = vmatpush1.bf16.msra.mxu0 %v665
        %689 = vmatprep.subr.bf16.mxu0 0
        %690 = vmatpush1.bf16.msra.mxu0 %v666
        %691 = vmatprep.subr.bf16.mxu0 0
        %692 = vmatpush1.bf16.msra.mxu0 %v667
        %693 = vmatprep.subr.bf16.mxu0 0
        %694 = vmatpush1.bf16.msra.mxu0 0
        %695 = vmatprep.subr.bf16.mxu0 0
        %696 = vmatpush1.bf16.msra.mxu0 0
        %697 = vmatprep.subr.bf16.mxu0 0
        %698 = vmatpush1.bf16.msra.mxu0 0
        %699 = vmatprep.subr.bf16.mxu0 0
        %700 = vmatpush1.bf16.msra.mxu0 0
        %701 = vmatprep.subr.bf16.mxu0 0
        %702 = vmatpush1.bf16.msra.mxu0 0
        %703 = vmatprep.subr.bf16.mxu0 0
        %704 = vmatpush1.bf16.msra.mxu0 0
        %705 = vmatprep.subr.bf16.mxu0 0
        %706 = vmatpush1.bf16.msra.mxu0 0
        %707 = vmatprep.subr.bf16.mxu0 0
        %708 = vmatpush1.bf16.msra.mxu0 0
        %709 = vmatprep.subr.bf16.mxu0 0
        %710 = vmatpush1.bf16.msra.mxu0 0
        %711 = vmatprep.subr.bf16.mxu0 0
        %712 = vmatpush1.bf16.msra.mxu0 0
        %713 = vmatprep.subr.bf16.mxu0 0
        %714 = vmatpush1.bf16.msra.mxu0 0
        %715 = vmatprep.subr.bf16.mxu0 0
        %716 = vmatpush1.bf16.msra.mxu0 0
        %717 = vmatprep.mubr.bf16.mxu0 0
        %718 = vmatmul.mubr.bf16.gmra.mrb[0].mxu0 %v674
        %v719 = vpop.f32.mrb[0].mxu0
        %v720 = vadd.f32 0.0, %v719
        %v721 = vpop.f32.mrb[0].mxu0
        %v722 = vpop.f32.mrb[0].mxu0
        %v723 = vadd.f32 0.0, %v722
        %v724 = vpop.f32.mrb[0].mxu0
        %725 = vmatprep.mubr.bf16.mxu0 0
        %726 = vmatmul.mubr.bf16.gmra.mrb[0].mxu0 %v677
        %v727 = vpop.f32.mrb[0].mxu0
        %v728 = vadd.f32 0.0, %v727
        %v729 = vpop.f32.mrb[0].mxu0
        %v730 = vpop.f32.mrb[0].mxu0
        %v731 = vadd.f32 0.0, %v730
        %v732 = vpop.f32.mrb[0].mxu0
        %733 = vmatprep.mubr.bf16.mxu0 0
        %734 = vmatmul.mubr.bf16.gmra.mrb[0].mxu0 %v680
        %v735 = vpop.f32.mrb[0].mxu0
        %v736 = vadd.f32 0.0, %v735
        %v737 = vpop.f32.mrb[0].mxu0
        %v738 = vpop.f32.mrb[0].mxu0
        %v739 = vadd.f32 0.0, %v738
        %v740 = vpop.f32.mrb[0].mxu0
        %741 = vmatprep.mubr.bf16.mxu0 0
        %742 = vmatmul.mubr.bf16.gmra.mrb[0].mxu0 %v683
        %v743 = vpop.f32.mrb[0].mxu0
        %v744 = vadd.f32 0.0, %v743
        %v745 = vpop.f32.mrb[0].mxu0
        %v746 = vpop.f32.mrb[0].mxu0
        %v747 = vadd.f32 0.0, %v746
        %v748 = vpop.f32.mrb[0].mxu0
        %749 = vdwg.mxu0
        %v750 = vld [vmem:[%s274] sm:$0x1]
        %v752 = vlaneseq
        %v753 = vshrl.u32 %v752, 7
        %v754 = vsub.s32 0, %v753
        %v755 = vrot.slane %v750, %v754
        %v757 = vmul.f32 %v720, %v755
        %v758 = vmul.f32 %v723, %v755
        %v759 = vmul.f32 %v728, %v755
        %v760 = vmul.f32 %v731, %v755
        %v761 = vmul.f32 %v736, %v755
        %v762 = vmul.f32 %v739, %v755
        %v763 = vmul.f32 %v744, %v755
        %v764 = vmul.f32 %v747, %v755
        %v765 = vld [vmem:[%s277] sm:$0x1]
        %v767 = vlaneseq
        %v768 = vshrl.u32 %v767, 7
        %v769 = vsub.s32 0, %v768
        %v770 = vrot.slane %v765, %v769
        %v772 = vadd.f32 %v757, %v770
        %v773 = vadd.f32 %v758, %v770
        %v774 = vadd.f32 %v759, %v770
        %v775 = vadd.f32 %v760, %v770
        %v776 = vadd.f32 %v761, %v770
        %v777 = vadd.f32 %v762, %v770
        %v778 = vadd.f32 %v763, %v770
        %v779 = vadd.f32 %v764, %v770
        %v780 = vmax.f32 %v772, 0.0
        %v781 = vmax.f32 %v773, 0.0
        %v782 = vmax.f32 %v774, 0.0
        %v783 = vmax.f32 %v775, 0.0
        %v784 = vmax.f32 %v776, 0.0
        %v785 = vmax.f32 %v777, 0.0
        %v786 = vmax.f32 %v778, 0.0
        %v787 = vmax.f32 %v779, 0.0
        %v788 = vpack.c.bf16 %v781, %v780
        %v789 = vpack.c.bf16 %v783, %v782
        %v790 = vpack.c.bf16 %v785, %v784
        %v791 = vpack.c.bf16 %v787, %v786
        %v796 = vunpack.c.l.b16 %v788
        %v797 = vunpack.c.h.b16 %v788
        %v798 = vunpack.c.l.b16 %v789
        %v799 = vunpack.c.h.b16 %v789
        %v800 = vunpack.c.l.b16 %v790
        %v801 = vunpack.c.h.b16 %v790
        %v802 = vunpack.c.l.b16 %v791
        %v803 = vunpack.c.h.b16 %v791
        %v804 = vpack.c.b16 %v796, %v796
        %v805 = vpack.c.b16 %v797, %v797
        %v806 = vpack.c.b16 %v798, %v798
        %v807 = vpack.c.b16 %v799, %v799
        %v808 = vpack.c.b16 %v800, %v800
        %v809 = vpack.c.b16 %v801, %v801
        %v810 = vpack.c.b16 %v802, %v802
        %v811 = vpack.c.b16 %v803, %v803
        %820 = vst [vmem:[%s258] sm:$0xf] %v804
        %821 = vst [vmem:[%s258 + $0x4] sm:$0xf] %v805
        %822 = vst [vmem:[%s258 + $0x8] sm:$0xf] %v806
        %823 = vst [vmem:[%s258 + $0xc] sm:$0xf] %v807
        %824 = vst [vmem:[%s258 + $0x10] sm:$0xf] %v808
        %825 = vst [vmem:[%s258 + $0x14] sm:$0xf] %v809
        %826 = vst [vmem:[%s258 + $0x18] sm:$0xf] %v810
        %827 = vst [vmem:[%s258 + $0x1c] sm:$0xf] %v811
        %s828 = sand.u32 %s155, 1
        %s829 = scalar_lea.sflag [#allocation3], %s828
        %s830 = sand.u32 %s155, 1
        %s831 = smul.addr %s830, 32
        %s832 = scalar_lea.vmem [#allocation2], %s831
        // Predicated region
        $region37: #{tpu_custom_call.1} parent=35 // pred_check
          %p833 = pneg %p165
        $region38: #{tpu_custom_call.1} parent=35 // pred_check_branch
          %835 = sbr.rel (%p833) target = $region40
        $region39: #{tpu_custom_call.1} parent=35 // pred_region
          %s836 = smul.u32 8, %s24
          %s838 = ssub.s32 512, 512
          %839 = vsyncadd %s829, %s838
          %s840 = sadd.s32 %s25, %s836
          %s841 = smul.addr %s23, 8
          %s842 = sadd.s32 %s840, %s841
          %s843 = smul.addr %s842, 64
          %s844 = scalar_lea.hbm %s4, %s843
          %s845 = sshll.u32 %s832, 4
          %s846 = int_to_ptr.vmem [resolvable:$true] %s845
          %851 = dma.vmem_to_hbm [thread:$0]  %s846, 512, %s844, %s829, 64, 64, 4
        $region40: #{tpu_custom_call.1} parent=35 // pred_fallthru
          _
      $region36: #{tpu_custom_call.1} parent=5 // pred_fallthru
        _
      %p852 = scmp.le.s32.totalorder 2, %s13
      // Predicated region
      $region41: #{tpu_custom_call.1} parent=5 // pred_check
        %p853 = pneg %p852
      $region42: #{tpu_custom_call.1} parent=5 // pred_check_branch
        %855 = sbr.rel (%p853) target = $region44
      $region43: #{tpu_custom_call.1} parent=5 // pred_region
        %s856 = ssub.s32 %s13, 2
        // Predicated region
        $region45: #{tpu_custom_call.1} parent=43 // pred_check
          %p857 = pneg %p171
        $region46: #{tpu_custom_call.1} parent=43 // pred_check_branch
          %859 = sbr.rel (%p857) target = $region48
        $region47: #{tpu_custom_call.1} parent=43 // pred_region
          %s860 = sand.u32 %s156, 1
          %s861 = scalar_lea.sflag [#allocation3], %s860
          %s862 = sand.u32 %s156, 1
          %s863 = smul.addr %s862, 32
          %s864 = scalar_lea.vmem [#allocation2], %s863
          %865 = dma.done %s861, 512
        $region48: #{tpu_custom_call.1} parent=43 // pred_fallthru
          _
      $region44: #{tpu_custom_call.1} parent=5 // pred_fallthru
        _
    $region6: #{tpu_custom_call.1} parent=1 // loop_footer
      %s17 = sadd.s32 1, %s13
    $region7: #{tpu_custom_call.1} parent=1 // loop_footer_branch
      %12 = sbr.rel target = $region3
    $region8: #{tpu_custom_call.1} parent=1 // loop_exit
      _
    %866 = vsyncpa [#allocation3], 1
    %s867 = scalar_lea.sflag [#allocation3], 1
    %868 = vsyncpa %s867, 1

// kernel: tpu_custom_call.1
$region0: #{tpu_custom_call.1}
  #allocation0 [shape = 'u32[]', space=smem, size = 0x4, offset = 0x4, fixed_abs, tag = 'smem constant byte address 0x4 - core index']
  #allocation1 [shape = 'u32[144,128]{1,0:T(1,128)}', space=vmem, size = 0x12000, scoped, tag = 'internal scratch']
  %s0 = inlined_call_operand.vmem [shape: bf16[2,1,9,9,16], index: 0, kind: input, shape index: {}]
  %s1 = inlined_call_operand.vmem [shape: bf16[64,128], index: 1, kind: input, shape index: {}]
  %s2 = inlined_call_operand.vmem [shape: f32[1,128], index: 2, kind: input, shape index: {}]
  %s3 = inlined_call_operand.vmem [shape: f32[1,128], index: 3, kind: input, shape index: {}]
  %s4 = inlined_call_operand.hbm [shape: bf16[2,64,128], index: 4, kind: output, shape index: {}]
  %s5 = sld [smem:[#allocation0]]
  $region49: #{tpu_custom_call.1} parent=0
    _
  %s7 = ssub.s32 1, %s5
  %s8 = scalar_select 0, %s7, %s5
  $region1: #{tpu_custom_call.1} parent=0
    #allocation2 [shape = 'u8[32768]{0}', space=vmem, size = 0x8000, scoped, tag = 'output window, operand 0']
    #allocation3 [shape = 's32[2]{0}', space=sflag, size = 0x8, scoped, tag = 'scoped memory for tpu_custom_call.1']
    %9 = vsyncpa [#allocation3], 0
    %s10 = scalar_lea.sflag [#allocation3], 1
    %11 = vsyncpa %s10, 0
    loop: start=0, step=1, limit=4
    $region2: #{tpu_custom_call.1} parent=1 // loop_pre_header
      _
    $region3: #{tpu_custom_call.1} parent=1 // loop_header
      %s13 = sphi 0, %s17
      %p14 = scmp.ge.s32.totalorder %s13, 4
      %s20 = sphi 0, %s39
      %s21 = sphi 0, %s35
      %s22 = sphi 0, %s31
      %s23 = sphi 0, %s20
      %s24 = sphi 0, %s21
      %s25 = sphi 0, %s22
      %s26 = sphi 0, %s23
      %s27 = sphi 0, %s24
      %s28 = sphi 0, %s25
      %s44 = sphi 0, %s46
      %s47 = sphi 0, %s44
      %s48 = sphi 0, %s47
      %s64 = sphi 0, %s48
      %s70 = sphi 0, %s72
      %s73 = sphi 0, %s70
      %s74 = sphi 0, %s73
      %s90 = sphi 0, %s74
      %s96 = sphi 0, %s98
      %s99 = sphi 0, %s96
      %s100 = sphi 0, %s99
      %s116 = sphi 0, %s100
      %s122 = sphi 0, %s124
      %s125 = sphi 0, %s122
      %s126 = sphi 0, %s125
      %s142 = sphi 0, %s126
      %s152 = sphi 0, %s154
      %s155 = sphi 0, %s152
      %s156 = sphi 0, %s155
      %s172 = sphi 0, %s156
    $region4: #{tpu_custom_call.1} parent=1 // loop_header_branch
      %16 = sbr.rel (%p14) target = $region8
    $region5: #{tpu_custom_call.1} parent=1 // loop_body
      %s18 = ssub.s32 %s13, 1
      %s19 = ssub.s32 %s13, 2
      %s29 = sadd.s32 1, %s22
      %p30 = scmp.ge.s32.totalorder %s29, 1
      %s31 = scalar_select %p30, 0, %s29
      %s32 = sadd.s32 1, %s21
      %s33 = scalar_select %p30, %s32, %s21
      %p34 = scmp.ge.s32.totalorder %s33, 1
      %s35 = scalar_select %p34, 0, %s33
      %s36 = sadd.s32 1, %s20
      %s37 = scalar_select %p34, %s36, %s20
      %p38 = scmp.ge.s32.totalorder %s37, 2
      %s39 = scalar_select %p38, 0, %s37
      %s40 = ssub.s32 %s20, %s39
      %s41 = ssub.s32 %s21, %s35
      %s42 = sor.u32 %s40, %s41
      %p43 = scmp.eq.s32.totalorder %s42, 0
      %s45 = sadd.s32 %s44, 1
      %s46 = scalar_select %p43, %s44, %s45
      %p49 = pneg %p43
      %p50 = scmp.eq.s32.totalorder %s13, 1
      %p51 = por %p49, %p50
      %p52 = scmp.ne.s32.totalorder %s44, %s47
      %p53 = scmp.eq.s32.totalorder %s13, 0
      %p54 = por %p52, %p53
      %p55 = scmp.ne.s32.totalorder %s44, %s47
      %p56 = scmp.eq.s32.totalorder %s18, 1
      %p57 = por %p55, %p56
      %p58 = scmp.ne.s32.totalorder %s47, %s48
      %p59 = scmp.eq.s32.totalorder %s18, 0
      %p60 = por %p58, %p59
      %p61 = scmp.ne.s32.totalorder %s47, %s48
      %p62 = scmp.eq.s32.totalorder %s19, 1
      %p63 = por %p61, %p62
      %p65 = scmp.ne.s32.totalorder %s48, %s64
      %p66 = scmp.eq.s32.totalorder %s19, 0
      %p67 = por %p65, %p66
      %s68 = ssub.s32 %s22, %s31
      %p69 = scmp.eq.s32.totalorder %s68, 0
      %s71 = sadd.s32 %s70, 1
      %s72 = scalar_select %p69, %s70, %s71
      %p75 = pneg %p69
      %p76 = scmp.eq.s32.totalorder %s13, 1
      %p77 = por %p75, %p76
      %p78 = scmp.ne.s32.totalorder %s70, %s73
      %p79 = scmp.eq.s32.totalorder %s13, 0
      %p80 = por %p78, %p79
      %p81 = scmp.ne.s32.totalorder %s70, %s73
      %p82 = scmp.eq.s32.totalorder %s18, 1
      %p83 = por %p81, %p82
      %p84 = scmp.ne.s32.totalorder %s73, %s74
      %p85 = scmp.eq.s32.totalorder %s18, 0
      %p86 = por %p84, %p85
      %p87 = scmp.ne.s32.totalorder %s73, %s74
      %p88 = scmp.eq.s32.totalorder %s19, 1
      %p89 = por %p87, %p88
      %p91 = scmp.ne.s32.totalorder %s74, %s90
      %p92 = scmp.eq.s32.totalorder %s19, 0
      %p93 = por %p91, %p92
      %s94 = ssub.s32 %s22, %s31
      %p95 = scmp.eq.s32.totalorder %s94, 0
      %s97 = sadd.s32 %s96, 1
      %s98 = scalar_select %p95, %s96, %s97
      %p101 = pneg %p95
      %p102 = scmp.eq.s32.totalorder %s13, 1
      %p103 = por %p101, %p102
      %p104 = scmp.ne.s32.totalorder %s96, %s99
      %p105 = scmp.eq.s32.totalorder %s13, 0
      %p106 = por %p104, %p105
      %p107 = scmp.ne.s32.totalorder %s96, %s99
      %p108 = scmp.eq.s32.totalorder %s18, 1
      %p109 = por %p107, %p108
      %p110 = scmp.ne.s32.totalorder %s99, %s100
      %p111 = scmp.eq.s32.totalorder %s18, 0
      %p112 = por %p110, %p111
      %p113 = scmp.ne.s32.totalorder %s99, %s100
      %p114 = scmp.eq.s32.totalorder %s19, 1
      %p115 = por %p113, %p114
      %p117 = scmp.ne.s32.totalorder %s100, %s116
      %p118 = scmp.eq.s32.totalorder %s19, 0
      %p119 = por %p117, %p118
      %s120 = ssub.s32 %s22, %s31
      %p121 = scmp.eq.s32.totalorder %s120, 0
      %s123 = sadd.s32 %s122, 1
      %s124 = scalar_select %p121, %s122, %s123
      %p127 = pneg %p121
      %p128 = scmp.eq.s32.totalorder %s13, 1
      %p129 = por %p127, %p128
      %p130 = scmp.ne.s32.totalorder %s122, %s125
      %p131 = scmp.eq.s32.totalorder %s13, 0
      %p132 = por %p130, %p131
      %p133 = scmp.ne.s32.totalorder %s122, %s125
      %p134 = scmp.eq.s32.totalorder %s18, 1
      %p135 = por %p133, %p134
      %p136 = scmp.ne.s32.totalorder %s125, %s126
      %p137 = scmp.eq.s32.totalorder %s18, 0
      %p138 = por %p136, %p137
      %p139 = scmp.ne.s32.totalorder %s125, %s126
      %p140 = scmp.eq.s32.totalorder %s19, 1
      %p141 = por %p139, %p140
      %p143 = scmp.ne.s32.totalorder %s126, %s142
      %p144 = scmp.eq.s32.totalorder %s19, 0
      %p145 = por %p143, %p144
      %s146 = ssub.s32 %s20, %s39
      %s147 = ssub.s32 %s21, %s35
      %s148 = sor.u32 %s146, %s147
      %s149 = ssub.s32 %s22, %s31
      %s150 = sor.u32 %s148, %s149
      %p151 = scmp.eq.s32.totalorder %s150, 0
      %s153 = sadd.s32 %s152, 1
      %s154 = scalar_select %p151, %s152, %s153
      %p157 = pneg %p151
      %p158 = scmp.eq.s32.totalorder %s13, 1
      %p159 = por %p157, %p158
      %p160 = scmp.ne.s32.totalorder %s152, %s155
      %p161 = scmp.eq.s32.totalorder %s13, 0
      %p162 = por %p160, %p161
      %p163 = scmp.ne.s32.totalorder %s152, %s155
      %p164 = scmp.eq.s32.totalorder %s18, 1
      %p165 = por %p163, %p164
      %p166 = scmp.ne.s32.totalorder %s155, %s156
      %p167 = scmp.eq.s32.totalorder %s18, 0
      %p168 = por %p166, %p167
      %p169 = scmp.ne.s32.totalorder %s155, %s156
      %p170 = scmp.eq.s32.totalorder %s19, 1
      %p171 = por %p169, %p170
      %p173 = scmp.ne.s32.totalorder %s156, %s172
      %p174 = scmp.eq.s32.totalorder %s19, 0
      %p175 = por %p173, %p174
      %p176 = scmp.le.s32.totalorder 1, %s13
      %p177 = scmp.lt.s32.totalorder %s13, 3
      %p178 = pnand %p176, %p177
      %p179 = pneg %p178
      // Predicated region
      $region9: #{tpu_custom_call.1} parent=5 // pred_check
        _
      $region10: #{tpu_custom_call.1} parent=5 // pred_check_branch
        %181 = sbr.rel (%p178) target = $region12
      $region11: #{tpu_custom_call.1} parent=5 // pred_region
        %s182 = ssub.s32 %s13, 1
        // Predicated region
        $region13: #{tpu_custom_call.1} parent=11 // pred_check
          %p183 = pneg %p86
        $region14: #{tpu_custom_call.1} parent=11 // pred_check_branch
          %185 = sbr.rel (%p183) target = $region16
        $region15: #{tpu_custom_call.1} parent=11 // pred_region
          %p186 = scmp.lt.s32.totalorder %s25, 0
          %s187 = scalar_select %p186, %s25, 0
          %s188 = smul.addr %s187, 4
          %s189 = scalar_lea.vmem %s1, %s188
        $region16: #{tpu_custom_call.1} parent=11 // pred_fallthru
          _
        // Predicated region
        $region17: #{tpu_custom_call.1} parent=11 // pred_check
          %p190 = pneg %p112
        $region18: #{tpu_custom_call.1} parent=11 // pred_check_branch
          %192 = sbr.rel (%p190) target = $region20
        $region19: #{tpu_custom_call.1} parent=11 // pred_region
          %p193 = scmp.lt.s32.totalorder %s25, 0
          %s194 = scalar_select %p193, %s25, 0
          %s195 = scalar_lea.vmem %s2, %s194
        $region20: #{tpu_custom_call.1} parent=11 // pred_fallthru
          _
        // Predicated region
        $region21: #{tpu_custom_call.1} parent=11 // pred_check
          %p196 = pneg %p138
        $region22: #{tpu_custom_call.1} parent=11 // pred_check_branch
          %198 = sbr.rel (%p196) target = $region24
        $region23: #{tpu_custom_call.1} parent=11 // pred_region
          %p199 = scmp.lt.s32.totalorder %s25, 0
          %s200 = scalar_select %p199, %s25, 0
          %s201 = scalar_lea.vmem %s3, %s200
        $region24: #{tpu_custom_call.1} parent=11 // pred_fallthru
          _
      $region12: #{tpu_custom_call.1} parent=5 // pred_fallthru
        _
      %p202 = scmp.lt.s32.totalorder %s13, 2
      // Predicated region
      $region25: #{tpu_custom_call.1} parent=5 // pred_check
        %p203 = pneg %p202
      $region26: #{tpu_custom_call.1} parent=5 // pred_check_branch
        %205 = sbr.rel (%p203) target = $region28
      $region27: #{tpu_custom_call.1} parent=5 // pred_region
        // Predicated region
        $region29: #{tpu_custom_call.1} parent=27 // pred_check
          %p206 = pneg %p54
        $region30: #{tpu_custom_call.1} parent=27 // pred_check_branch
          %208 = sbr.rel (%p206) target = $region32
        $region31: #{tpu_custom_call.1} parent=27 // pred_region
          %p209 = scmp.lt.s32.totalorder %s20, 1
          %s210 = scalar_select %p209, %s20, 1
          %p211 = scmp.lt.s32.totalorder %s21, 0
          %s212 = scalar_select %p211, %s21, 0
          %s213 = smul.addr %s212, 18
          %s214 = smul.addr %s210, 18
          %s215 = sadd.s32 %s213, %s214
          %s216 = smul.addr %s215, 4
          %s217 = scalar_lea.vmem %s0, %s216
        $region32: #{tpu_custom_call.1} parent=27 // pred_fallthru
          _
      $region28: #{tpu_custom_call.1} parent=5 // pred_fallthru
        _
      %p218 = scmp.le.s32.totalorder 1, %s13
      %p219 = scmp.lt.s32.totalorder %s13, 3
      %p220 = pnand %p218, %p219
      %p221 = pneg %p220
      // Predicated region
      $region33: #{tpu_custom_call.1} parent=5 // pred_check
        _
      $region34: #{tpu_custom_call.1} parent=5 // pred_check_branch
        %223 = sbr.rel (%p220) target = $region36
      $region35: #{tpu_custom_call.1} parent=5 // pred_region
        %s224 = ssub.s32 %s13, 1
        %p225 = scmp.lt.s32.totalorder %s23, 1
        %s226 = scalar_select %p225, %s23, 1
        %p227 = scmp.lt.s32.totalorder %s24, 0
        %s228 = scalar_select %p227, %s24, 0
        %s229 = smul.addr %s228, 18
        %s230 = smul.addr %s226, 18
        %s231 = sadd.s32 %s229, %s230
        %s232 = smul.addr %s231, 4
        %s233 = scalar_lea.vmem %s0, %s232
        %p234 = pneg %p60
        %p235 = pneg %p57
        %p236 = scmp.lt.s32.totalorder %s25, 0
        %s237 = scalar_select %p236, %s25, 0
        %s238 = smul.addr %s237, 4
        %s239 = scalar_lea.vmem %s1, %s238
        %p240 = pneg %p86
        %p241 = pneg %p83
        %p242 = scmp.lt.s32.totalorder %s25, 0
        %s243 = scalar_select %p242, %s25, 0
        %s244 = scalar_lea.vmem %s2, %s243
        %p245 = pneg %p112
        %p246 = pneg %p109
        %p247 = scmp.lt.s32.totalorder %s25, 0
        %s248 = scalar_select %p247, %s25, 0
        %s249 = scalar_lea.vmem %s3, %s248
        %p250 = pneg %p138
        %p251 = pneg %p135
        %p252 = pneg %p168
        %p253 = pneg %p165
        %s254 = sand.u32 %s155, 1
        %s255 = scalar_lea.sflag [#allocation3], %s254
        %s256 = sand.u32 %s155, 1
        %s257 = smul.addr %s256, 32
        %s258 = scalar_lea.vmem [#allocation2], %s257
        %p259 = scmp.lt.s32.totalorder %s23, 1
        %s260 = scalar_select %p259, %s23, 1
        %p261 = scmp.lt.s32.totalorder %s24, 0
        %s262 = scalar_select %p261, %s24, 0
        %s263 = smul.addr %s262, 18
        %s264 = smul.addr %s260, 18
        %s265 = sadd.s32 %s263, %s264
        %s266 = smul.addr %s265, 4
        %s267 = scalar_lea.vmem %s0, %s266
        %p268 = scmp.lt.s32.totalorder %s25, 0
        %s269 = scalar_select %p268, %s25, 0
        %s270 = smul.addr %s269, 4
        %s271 = scalar_lea.vmem %s1, %s270
        %p272 = scmp.lt.s32.totalorder %s25, 0
        %s273 = scalar_select %p272, %s25, 0
        %s274 = scalar_lea.vmem %s2, %s273
        %p275 = scmp.lt.s32.totalorder %s25, 0
        %s276 = scalar_select %p275, %s25, 0
        %s277 = scalar_lea.vmem %s3, %s276
        %s278 = smul.u32 8, %s24
        %v280 = vld [vmem:[%s267] sm:$0xf]
        %v281 = vld [vmem:[%s267 + $0x8] sm:$0xf]
        %v282 = vld [vmem:[%s267 + $0x10] sm:$0xf]
        %v283 = vld [vmem:[%s267 + $0x18] sm:$0xf]
        %v284 = vld [vmem:[%s267 + $0x20] sm:$0xf]
        %v285 = vld [vmem:[%s267 + $0x28] sm:$0xf]
        %v286 = vld [vmem:[%s267 + $0x30] sm:$0xf]
        %v287 = vld [vmem:[%s267 + $0x38] sm:$0xf]
        %v288 = vld [vmem:[%s267 + $0x4] sm:$0x1]
        %v289 = vld [vmem:[%s267 + $0xc] sm:$0x1]
        %v290 = vld [vmem:[%s267 + $0x14] sm:$0x1]
        %v291 = vld [vmem:[%s267 + $0x1c] sm:$0x1]
        %v292 = vld [vmem:[%s267 + $0x24] sm:$0x1]
        %v293 = vld [vmem:[%s267 + $0x2c] sm:$0x1]
        %v294 = vld [vmem:[%s267 + $0x34] sm:$0x1]
        %v295 = vld [vmem:[%s267 + $0x3c] sm:$0x1]
        %s296 = scalar_lea.vmem %s267, 8
        %v297 = vld [vmem:[%s296] sm:$0xf]
        %v298 = vld [vmem:[%s296 + $0x8] sm:$0xf]
        %v299 = vld [vmem:[%s296 + $0x10] sm:$0xf]
        %v300 = vld [vmem:[%s296 + $0x18] sm:$0xf]
        %v301 = vld [vmem:[%s296 + $0x20] sm:$0xf]
        %v302 = vld [vmem:[%s296 + $0x28] sm:$0xf]
        %v303 = vld [vmem:[%s296 + $0x30] sm:$0xf]
        %v304 = vld [vmem:[%s296 + $0x38] sm:$0xf]
        %v305 = vld [vmem:[%s296 + $0x4] sm:$0x1]
        %v306 = vld [vmem:[%s296 + $0xc] sm:$0x1]
        %v307 = vld [vmem:[%s296 + $0x14] sm:$0x1]
        %v308 = vld [vmem:[%s296 + $0x1c] sm:$0x1]
        %v309 = vld [vmem:[%s296 + $0x24] sm:$0x1]
        %v310 = vld [vmem:[%s296 + $0x2c] sm:$0x1]
        %v311 = vld [vmem:[%s296 + $0x34] sm:$0x1]
        %v312 = vld [vmem:[%s296 + $0x3c] sm:$0x1]
        %v329 = vunpack.c.l.b16 %v280
        %v330 = vunpack.c.l.b16 %v288
        %v331 = vunpack.c.l.b16 %v281
        %v332 = vunpack.c.l.b16 %v289
        %v333 = vunpack.c.l.b16 %v282
        %v334 = vunpack.c.l.b16 %v290
        %v335 = vunpack.c.l.b16 %v283
        %v336 = vunpack.c.l.b16 %v291
        %v337 = vunpack.c.l.b16 %v284
        %v338 = vunpack.c.l.b16 %v292
        %v339 = vunpack.c.l.b16 %v285
        %v340 = vunpack.c.l.b16 %v293
        %v341 = vunpack.c.l.b16 %v286
        %v342 = vunpack.c.l.b16 %v294
        %v343 = vunpack.c.l.b16 %v287
        %v344 = vunpack.c.l.b16 %v295
        %v345 = vpack.c.b16 %v330, %v329
        %v346 = vpack.c.b16 %v332, %v331
        %v347 = vpack.c.b16 %v334, %v333
        %v348 = vpack.c.b16 %v336, %v335
        %v349 = vpack.c.b16 %v338, %v337
        %v350 = vpack.c.b16 %v340, %v339
        %v351 = vpack.c.b16 %v342, %v341
        %v352 = vpack.c.b16 %v344, %v343
        %v354 = vshrl.u32 %v345, 16
        %v356 = vshll.u32 %v345, 16
        %v358 = vrot.slane %v356, 1
        %v359 = vor.u32 %v354, %v358
        %v361 = vshrl.u32 %v346, 16
        %v363 = vshll.u32 %v346, 16
        %v365 = vrot.slane %v363, 1
        %v366 = vor.u32 %v361, %v365
        %v368 = vshrl.u32 %v347, 16
        %v370 = vshll.u32 %v347, 16
        %v372 = vrot.slane %v370, 1
        %v373 = vor.u32 %v368, %v372
        %v375 = vshrl.u32 %v348, 16
        %v377 = vshll.u32 %v348, 16
        %v379 = vrot.slane %v377, 1
        %v380 = vor.u32 %v375, %v379
        %v382 = vshrl.u32 %v349, 16
        %v384 = vshll.u32 %v349, 16
        %v386 = vrot.slane %v384, 1
        %v387 = vor.u32 %v382, %v386
        %v389 = vshrl.u32 %v350, 16
        %v391 = vshll.u32 %v350, 16
        %v393 = vrot.slane %v391, 1
        %v394 = vor.u32 %v389, %v393
        %v396 = vshrl.u32 %v351, 16
        %v398 = vshll.u32 %v351, 16
        %v400 = vrot.slane %v398, 1
        %v401 = vor.u32 %v396, %v400
        %v403 = vshrl.u32 %v352, 16
        %v405 = vshll.u32 %v352, 16
        %v407 = vrot.slane %v405, 1
        %v408 = vor.u32 %v403, %v407
        %409 = vrot.lane.b32.xlu0 %v359, 16
        %v410 = vpop.permute.xlu0 %409
        %411 = vrot.lane.b32.xlu0 %v366, 16
        %v412 = vpop.permute.xlu0 %411
        %413 = vrot.lane.b32.xlu0 %v373, 16
        %v414 = vpop.permute.xlu0 %413
        %415 = vrot.lane.b32.xlu0 %v380, 16
        %v416 = vpop.permute.xlu0 %415
        %417 = vrot.lane.b32.xlu0 %v387, 16
        %v418 = vpop.permute.xlu0 %417
        %419 = vrot.lane.b32.xlu0 %v394, 16
        %v420 = vpop.permute.xlu0 %419
        %421 = vrot.lane.b32.xlu0 %v401, 16
        %v422 = vpop.permute.xlu0 %421
        %423 = vrot.lane.b32.xlu0 %v408, 16
        %v424 = vpop.permute.xlu0 %423
        %v433 = vunpack.c.l.b16 %v297
        %v434 = vunpack.c.l.b16 %v298
        %v435 = vunpack.c.l.b16 %v299
        %v436 = vunpack.c.l.b16 %v300
        %v437 = vunpack.c.l.b16 %v301
        %v438 = vunpack.c.l.b16 %v302
        %v439 = vunpack.c.l.b16 %v303
        %v440 = vunpack.c.l.b16 %v304
        %v441 = vpack.c.b16 %v433, %v433
        %v442 = vpack.c.b16 %v434, %v434
        %v443 = vpack.c.b16 %v435, %v435
        %v444 = vpack.c.b16 %v436, %v436
        %v445 = vpack.c.b16 %v437, %v437
        %v446 = vpack.c.b16 %v438, %v438
        %v447 = vpack.c.b16 %v439, %v439
        %v448 = vpack.c.b16 %v440, %v440
        %449 = vrot.lane.b32.xlu0 %v441, 32
        %v450 = vpop.permute.xlu0 %449
        %451 = vrot.lane.b32.xlu0 %v442, 32
        %v452 = vpop.permute.xlu0 %451
        %453 = vrot.lane.b32.xlu0 %v443, 32
        %v454 = vpop.permute.xlu0 %453
        %455 = vrot.lane.b32.xlu0 %v444, 32
        %v456 = vpop.permute.xlu0 %455
        %457 = vrot.lane.b32.xlu0 %v445, 32
        %v458 = vpop.permute.xlu0 %457
        %459 = vrot.lane.b32.xlu0 %v446, 32
        %v460 = vpop.permute.xlu0 %459
        %461 = vrot.lane.b32.xlu0 %v447, 32
        %v462 = vpop.permute.xlu0 %461
        %463 = vrot.lane.b32.xlu0 %v448, 32
        %v464 = vpop.permute.xlu0 %463
        %v473 = vunpack.c.l.b16 %v305
        %v474 = vunpack.c.l.b16 %v306
        %v475 = vunpack.c.l.b16 %v307
        %v476 = vunpack.c.l.b16 %v308
        %v477 = vunpack.c.l.b16 %v309
        %v478 = vunpack.c.l.b16 %v310
        %v479 = vunpack.c.l.b16 %v311
        %v480 = vunpack.c.l.b16 %v312
        %v481 = vpack.c.b16 %v473, %v433
        %v482 = vpack.c.b16 %v474, %v434
        %v483 = vpack.c.b16 %v475, %v435
        %v484 = vpack.c.b16 %v476, %v436
        %v485 = vpack.c.b16 %v477, %v437
        %v486 = vpack.c.b16 %v478, %v438
        %v487 = vpack.c.b16 %v479, %v439
        %v488 = vpack.c.b16 %v480, %v440
        %v490 = vshrl.u32 %v481, 16
        %v492 = vshll.u32 %v481, 16
        %v494 = vrot.slane %v492, 1
        %v495 = vor.u32 %v490, %v494
        %v497 = vshrl.u32 %v482, 16
        %v499 = vshll.u32 %v482, 16
        %v501 = vrot.slane %v499, 1
        %v502 = vor.u32 %v497, %v501
        %v504 = vshrl.u32 %v483, 16
        %v506 = vshll.u32 %v483, 16
        %v508 = vrot.slane %v506, 1
        %v509 = vor.u32 %v504, %v508
        %v511 = vshrl.u32 %v484, 16
        %v513 = vshll.u32 %v484, 16
        %v515 = vrot.slane %v513, 1
        %v516 = vor.u32 %v511, %v515
        %v518 = vshrl.u32 %v485, 16
        %v520 = vshll.u32 %v485, 16
        %v522 = vrot.slane %v520, 1
        %v523 = vor.u32 %v518, %v522
        %v525 = vshrl.u32 %v486, 16
        %v527 = vshll.u32 %v486, 16
        %v529 = vrot.slane %v527, 1
        %v530 = vor.u32 %v525, %v529
        %v532 = vshrl.u32 %v487, 16
        %v534 = vshll.u32 %v487, 16
        %v536 = vrot.slane %v534, 1
        %v537 = vor.u32 %v532, %v536
        %v539 = vshrl.u32 %v488, 16
        %v541 = vshll.u32 %v488, 16
        %v543 = vrot.slane %v541, 1
        %v544 = vor.u32 %v539, %v543
        %545 = vrot.lane.b32.xlu0 %v495, 48
        %v546 = vpop.permute.xlu0 %545
        %547 = vrot.lane.b32.xlu0 %v502, 48
        %v548 = vpop.permute.xlu0 %547
        %549 = vrot.lane.b32.xlu0 %v509, 48
        %v550 = vpop.permute.xlu0 %549
        %551 = vrot.lane.b32.xlu0 %v516, 48
        %v552 = vpop.permute.xlu0 %551
        %553 = vrot.lane.b32.xlu0 %v523, 48
        %v554 = vpop.permute.xlu0 %553
        %555 = vrot.lane.b32.xlu0 %v530, 48
        %v556 = vpop.permute.xlu0 %555
        %557 = vrot.lane.b32.xlu0 %v537, 48
        %v558 = vpop.permute.xlu0 %557
        %559 = vrot.lane.b32.xlu0 %v544, 48
        %v560 = vpop.permute.xlu0 %559
        %vm561 = vcmask 130048
        %v564 = vsel %vm561, %v280, %v410
        %v567 = vsel %vm561, %v281, %v412
        %v570 = vsel %vm561, %v282, %v414
        %v573 = vsel %vm561, %v283, %v416
        %v576 = vsel %vm561, %v284, %v418
        %v579 = vsel %vm561, %v285, %v420
        %v582 = vsel %vm561, %v286, %v422
        %v585 = vsel %vm561, %v287, %v424
        %vm586 = vcmask 261120
        %v588 = vsel %vm586, %v564, %v450
        %v590 = vsel %vm586, %v567, %v452
        %v592 = vsel %vm586, %v570, %v454
        %v594 = vsel %vm586, %v573, %v456
        %v596 = vsel %vm586, %v576, %v458
        %v598 = vsel %vm586, %v579, %v460
        %v600 = vsel %vm586, %v582, %v462
        %v602 = vsel %vm586, %v585, %v464
        %vm603 = vcmask 392192
        %v605 = vsel %vm603, %v588, %v546
        %v607 = vsel %vm603, %v590, %v548
        %v609 = vsel %vm603, %v592, %v550
        %v611 = vsel %vm603, %v594, %v552
        %v613 = vsel %vm603, %v596, %v554
        %v615 = vsel %vm603, %v598, %v556
        %v617 = vsel %vm603, %v600, %v558
        %v619 = vsel %vm603, %v602, %v560
        %v620 = vld [vmem:[%s271] sm:$0xf]
        %v621 = vld [vmem:[%s271 + $0x4] sm:$0xf]
        %v622 = vld [vmem:[%s271 + $0x8] sm:$0xf]
        %v623 = vld [vmem:[%s271 + $0xc] sm:$0xf]
        %v624 = vld [vmem:[%s271 + $0x10] sm:$0xf]
        %v625 = vld [vmem:[%s271 + $0x14] sm:$0xf]
        %v626 = vld [vmem:[%s271 + $0x18] sm:$0xf]
        %v627 = vld [vmem:[%s271 + $0x1c] sm:$0xf]
        %v636 = vunpack.c.l.b16 %v605
        %v637 = vunpack.c.l.b16 %v607
        %v638 = vunpack.c.l.b16 %v609
        %v639 = vunpack.c.l.b16 %v611
        %v640 = vunpack.c.l.b16 %v613
        %v641 = vunpack.c.l.b16 %v615
        %v642 = vunpack.c.l.b16 %v617
        %v643 = vunpack.c.l.b16 %v619
        %v644 = vpack.c.b16 %v637, %v636
        %v645 = vpack.c.b16 %v639, %v638
        %v646 = vpack.c.b16 %v641, %v640
        %v647 = vpack.c.b16 %v643, %v642
        %v656 = vunpack.c.l.b16 %v620
        %v657 = vunpack.c.l.b16 %v621
        %v658 = vunpack.c.l.b16 %v622
        %v659 = vunpack.c.l.b16 %v623
        %v660 = vunpack.c.l.b16 %v624
        %v661 = vunpack.c.l.b16 %v625
        %v662 = vunpack.c.l.b16 %v626
        %v663 = vunpack.c.l.b16 %v627
        %v664 = vpack.c.b16 %v657, %v656
        %v665 = vpack.c.b16 %v659, %v658
        %v666 = vpack.c.b16 %v661, %v660
        %v667 = vpack.c.b16 %v663, %v662
        %vm672 = vcmask 523264
        %v674 = vsel %vm672, %v644, 0
        %v677 = vsel %vm672, %v645, 0
        %v680 = vsel %vm672, %v646, 0
        %v683 = vsel %vm672, %v647, 0
        %685 = vmatprep.subr.bf16.mxu0 0
        %686 = vmatpush1.bf16.msra.mxu0 %v664
        %687 = vmatprep.subr.bf16.mxu0 0
        %688 = vmatpush1.bf16.msra.mxu0 %v665
        %689 = vmatprep.subr.bf16.mxu0 0
        %690 = vmatpush1.bf16.msra.mxu0 %v666
        %691 = vmatprep.subr.bf16.mxu0 0
        %692 = vmatpush1.bf16.msra.mxu0 %v667
        %693 = vmatprep.subr.bf16.mxu0 0
        %694 = vmatpush1.bf16.msra.mxu0 0
        %695 = vmatprep.subr.bf16.mxu0 0
        %696 = vmatpush1.bf16.msra.mxu0 0
        %697 = vmatprep.subr.bf16.mxu0 0
        %698 = vmatpush1.bf16.msra.mxu0 0
        %699 = vmatprep.subr.bf16.mxu0 0
        %700 = vmatpush1.bf16.msra.mxu0 0
        %701 = vmatprep.subr.bf16.mxu0 0
        %702 = vmatpush1.bf16.msra.mxu0 0
        %703 = vmatprep.subr.bf16.mxu0 0
        %704 = vmatpush1.bf16.msra.mxu0 0
        %705 = vmatprep.subr.bf16.mxu0 0
        %706 = vmatpush1.bf16.msra.mxu0 0
        %707 = vmatprep.subr.bf16.mxu0 0
        %708 = vmatpush1.bf16.msra.mxu0 0
        %709 = vmatprep.subr.bf16.mxu0 0
        %710 = vmatpush1.bf16.msra.mxu0 0
        %711 = vmatprep.subr.bf16.mxu0 0
        %712 = vmatpush1.bf16.msra.mxu0 0
        %713 = vmatprep.subr.bf16.mxu0 0
        %714 = vmatpush1.bf16.msra.mxu0 0
        %715 = vmatprep.subr.bf16.mxu0 0
        %716 = vmatpush1.bf16.msra.mxu0 0
        %717 = vmatprep.mubr.bf16.mxu0 0
        %718 = vmatmul.mubr.bf16.gmra.mrb[0].mxu0 %v674
        %v719 = vpop.f32.mrb[0].mxu0
        %v720 = vadd.f32 0.0, %v719
        %v721 = vpop.f32.mrb[0].mxu0
        %v722 = vpop.f32.mrb[0].mxu0
        %v723 = vadd.f32 0.0, %v722
        %v724 = vpop.f32.mrb[0].mxu0
        %725 = vmatprep.mubr.bf16.mxu0 0
        %726 = vmatmul.mubr.bf16.gmra.mrb[0].mxu0 %v677
        %v727 = vpop.f32.mrb[0].mxu0
        %v728 = vadd.f32 0.0, %v727
        %v729 = vpop.f32.mrb[0].mxu0
        %v730 = vpop.f32.mrb[0].mxu0
        %v731 = vadd.f32 0.0, %v730
        %v732 = vpop.f32.mrb[0].mxu0
        %733 = vmatprep.mubr.bf16.mxu0 0
        %734 = vmatmul.mubr.bf16.gmra.mrb[0].mxu0 %v680
        %v735 = vpop.f32.mrb[0].mxu0
        %v736 = vadd.f32 0.0, %v735
        %v737 = vpop.f32.mrb[0].mxu0
        %v738 = vpop.f32.mrb[0].mxu0
        %v739 = vadd.f32 0.0, %v738
        %v740 = vpop.f32.mrb[0].mxu0
        %741 = vmatprep.mubr.bf16.mxu0 0
        %742 = vmatmul.mubr.bf16.gmra.mrb[0].mxu0 %v683
        %v743 = vpop.f32.mrb[0].mxu0
        %v744 = vadd.f32 0.0, %v743
        %v745 = vpop.f32.mrb[0].mxu0
        %v746 = vpop.f32.mrb[0].mxu0
        %v747 = vadd.f32 0.0, %v746
        %v748 = vpop.f32.mrb[0].mxu0
        %749 = vdwg.mxu0
        %v750 = vld [vmem:[%s274] sm:$0x1]
        %v752 = vlaneseq
        %v753 = vshrl.u32 %v752, 7
        %v754 = vsub.s32 0, %v753
        %v755 = vrot.slane %v750, %v754
        %v757 = vmul.f32 %v720, %v755
        %v758 = vmul.f32 %v723, %v755
        %v759 = vmul.f32 %v728, %v755
        %v760 = vmul.f32 %v731, %v755
        %v761 = vmul.f32 %v736, %v755
        %v762 = vmul.f32 %v739, %v755
        %v763 = vmul.f32 %v744, %v755
        %v764 = vmul.f32 %v747, %v755
        %v765 = vld [vmem:[%s277] sm:$0x1]
        %v767 = vlaneseq
        %v768 = vshrl.u32 %v767, 7
        %v769 = vsub.s32 0, %v768
        %v770 = vrot.slane %v765, %v769
        %v772 = vadd.f32 %v757, %v770
        %v773 = vadd.f32 %v758, %v770
        %v774 = vadd.f32 %v759, %v770
        %v775 = vadd.f32 %v760, %v770
        %v776 = vadd.f32 %v761, %v770
        %v777 = vadd.f32 %v762, %v770
        %v778 = vadd.f32 %v763, %v770
        %v779 = vadd.f32 %v764, %v770
        %v780 = vmax.f32 %v772, 0.0
        %v781 = vmax.f32 %v773, 0.0
        %v782 = vmax.f32 %v774, 0.0
        %v783 = vmax.f32 %v775, 0.0
        %v784 = vmax.f32 %v776, 0.0
        %v785 = vmax.f32 %v777, 0.0
        %v786 = vmax.f32 %v778, 0.0
        %v787 = vmax.f32 %v779, 0.0
        %v788 = vpack.c.bf16 %v781, %v780
        %v789 = vpack.c.bf16 %v783, %v782
        %v790 = vpack.c.bf16 %v785, %v784
        %v791 = vpack.c.bf16 %v787, %v786
        %v796 = vunpack.c.l.b16 %v788
        %v797 = vunpack.c.h.b16 %v788
        %v798 = vunpack.c.l.b16 %v789
        %v799 = vunpack.c.h.b16 %v789
        %v800 = vunpack.c.l.b16 %v790
        %v801 = vunpack.c.h.b16 %v790
        %v802 = vunpack.c.l.b16 %v791
        %v803 = vunpack.c.h.b16 %v791
        %v804 = vpack.c.b16 %v796, %v796
        %v805 = vpack.c.b16 %v797, %v797
        %v806 = vpack.c.b16 %v798, %v798
        %v807 = vpack.c.b16 %v799, %v799
        %v808 = vpack.c.b16 %v800, %v800
        %v809 = vpack.c.b16 %v801, %v801
        %v810 = vpack.c.b16 %v802, %v802
        %v811 = vpack.c.b16 %v803, %v803
        %820 = vst [vmem:[%s258] sm:$0xf] %v804
        %821 = vst [vmem:[%s258 + $0x4] sm:$0xf] %v805
        %822 = vst [vmem:[%s258 + $0x8] sm:$0xf] %v806
        %823 = vst [vmem:[%s258 + $0xc] sm:$0xf] %v807
        %824 = vst [vmem:[%s258 + $0x10] sm:$0xf] %v808
        %825 = vst [vmem:[%s258 + $0x14] sm:$0xf] %v809
        %826 = vst [vmem:[%s258 + $0x18] sm:$0xf] %v810
        %827 = vst [vmem:[%s258 + $0x1c] sm:$0xf] %v811
        %s828 = sand.u32 %s155, 1
        %s829 = scalar_lea.sflag [#allocation3], %s828
        %s830 = sand.u32 %s155, 1
        %s831 = smul.addr %s830, 32
        %s832 = scalar_lea.vmem [#allocation2], %s831
        // Predicated region
        $region37: #{tpu_custom_call.1} parent=35 // pred_check
          %p833 = pneg %p165
        $region38: #{tpu_custom_call.1} parent=35 // pred_check_branch
          %835 = sbr.rel (%p833) target = $region40
        $region39: #{tpu_custom_call.1} parent=35 // pred_region
          %s836 = smul.u32 8, %s24
          %s838 = ssub.s32 512, 512
          %839 = vsyncadd %s829, %s838
          %s840 = sadd.s32 %s25, %s836
          %s841 = smul.addr %s23, 8
          %s842 = sadd.s32 %s840, %s841
          %s843 = smul.addr %s842, 64
          %s844 = scalar_lea.hbm %s4, %s843
          %s845 = sshll.u32 %s832, 4
          %s846 = int_to_ptr.vmem [resolvable:$true] %s845
          %851 = dma.vmem_to_hbm [thread:$0]  %s846, 512, %s844, %s829, 64, 64, 4
        $region40: #{tpu_custom_call.1} parent=35 // pred_fallthru
          _
      $region36: #{tpu_custom_call.1} parent=5 // pred_fallthru
        _
      %p852 = scmp.le.s32.totalorder 2, %s13
      // Predicated region
      $region41: #{tpu_custom_call.1} parent=5 // pred_check
        %p853 = pneg %p852
      $region42: #{tpu_custom_call.1} parent=5 // pred_check_branch
        %855 = sbr.rel (%p853) target = $region44
      $region43: #{tpu_custom_call.1} parent=5 // pred_region
        %s856 = ssub.s32 %s13, 2
        // Predicated region
        $region45: #{tpu_custom_call.1} parent=43 // pred_check
          %p857 = pneg %p171
        $region46: #{tpu_custom_call.1} parent=43 // pred_check_branch
          %859 = sbr.rel (%p857) target = $region48
        $region47: #{tpu_custom_call.1} parent=43 // pred_region
          %s860 = sand.u32 %s156, 1
          %s861 = scalar_lea.sflag [#allocation3], %s860
          %s862 = sand.u32 %s156, 1
          %s863 = smul.addr %s862, 32
          %s864 = scalar_lea.vmem [#allocation2], %s863
          %865 = dma.done %s861, 512
        $region48: #{tpu_custom_call.1} parent=43 // pred_fallthru
          _
      $region44: #{tpu_custom_call.1} parent=5 // pred_fallthru
        _
    $region6: #{tpu_custom_call.1} parent=1 // loop_footer
      %s17 = sadd.s32 1, %s13
    $region7: #{tpu_custom_call.1} parent=1 // loop_footer_branch
      %12 = sbr.rel target = $region3
    $region8: #{tpu_custom_call.1} parent=1 // loop_exit
      _
    %866 = vsyncpa [#allocation3], 1
    %s867 = scalar_lea.sflag [#allocation3], 1
    %868 = vsyncpa %s867, 1

</llo_original>
